<compile_context>
chip_gen: v7x
topology: tpu7x:2x2x1
jax: 0.10.0
libtpu: 0.0.40
codegen_flags: <defaults>
</compile_context>

<pallas_src>
import jax
import jax.numpy as jnp
from jax import lax
from jax.experimental import pallas as pl
from jax.experimental.pallas import tpu as pltpu


# ------------------------------ small helpers -------------------------------

def _round_up(n, m):
    return ((n + m - 1) // m) * m


def _pick_b_tile(bp):
    """Batch tile: large MXU M, but keep >=2 batch blocks when the batch
    allows it so the 'parallel' axis can shard across v7x's two TensorCores."""
    if bp <= 8:
        return bp
    tile = min(256, max(8, (bp // 2) // 8 * 8))
    while bp % tile:
        tile -= 8
    return max(tile, 8)


def _vmem_footprint(bt, dp, g, h, cp, n_layers):
    """Return (fixed_bytes, bytes_per_unit_of_t_chunk) for the fused kernel."""
    bf16, f32 = 2, 4
    # Weights/biases (double-buffered BlockSpec copies) + h/c state + out block.
    fixed = 2 * ((dp * g + max(n_layers - 1, 1) * h * g + n_layers * h * g
                  + h * cp) * bf16 + (n_layers * g + cp) * f32)
    fixed += 2 * n_layers * bt * h * f32 + 2 * bt * cp * f32
    # Per unit of t_chunk: x block (f32, double buffered) + gates + y scratch.
    per_tc = bt * (2 * dp * f32 + g * f32 + h * f32)
    return fixed, per_tc


# ------------------------------- fused kernel -------------------------------

def _make_fused_kernel(*, n_layers, H, G, T, TC, Bt, unroll, needs_mask):
    """Fused multi-layer LSTM + FC + sigmoid kernel body (one grid step =
    one batch block x one time chunk)."""

    def split_gates(pre):
        # pre: (Bt, G) f32 pre-activations packed [i | f | g | o] (PyTorch
        # order); lanes >= 4H (if any) are inert zero padding.  One sigmoid +
        # one tanh pass over the packed slab, then static lane slices.
        sig = jax.nn.sigmoid(pre)
        tnh = jnp.tanh(pre)
        i = sig[:, 0 * H:1 * H]
        f = sig[:, 1 * H:2 * H]
        g = tnh[:, 2 * H:3 * H]
        o = sig[:, 3 * H:4 * H]
        return i, f, g, o

    def kernel(x_ref, wih0_ref, wihr_ref, whh_ref, b_ref, fcw_ref, fcb_ref,
               o_ref, gates_scr, y_scr, h_scr, c_scr):
        tt = pl.program_id(1)

        # Reset the recurrent state at the first time chunk of a batch block.
        @pl.when(tt == 0)
        def _():
            h_scr[...] = jnp.zeros_like(h_scr)
            c_scr[...] = jnp.zeros_like(c_scr)

        t0 = tt * TC  # global time index of the first step in this chunk

        def run_layer(layer, src_flat_bf16, emit_y):
            # Hoisted input projection for the whole chunk: one MXU matmul,
            # bias folded in once.  bf16 operands, f32 accumulation.
            wih = wih0_ref[...] if layer == 0 else wihr_ref[layer - 1]
            proj = jnp.dot(src_flat_bf16, wih,
                           preferred_element_type=jnp.float32)
            gates_scr[...] = (proj + b_ref[layer]).reshape(TC, Bt, G)
            whh = whh_ref[layer]  # (H, G) bf16, hoisted out of the loop

            def step(t, carry):
                h, c = carry
                pre = gates_scr[t] + jnp.dot(
                    h.astype(jnp.bfloat16), whh,
                    preferred_element_type=jnp.float32)
                i, f, g, o = split_gates(pre)
                c_new = f * c + i * g
                h_new = o * jnp.tanh(c_new)
                if needs_mask:  # padded tail steps: hold the state
                    valid = (t0 + t) < T
                    c_new = jnp.where(valid, c_new, c)
                    h_new = jnp.where(valid, h_new, h)
                if emit_y:
                    y_scr[t] = h_new
                return h_new, c_new

            h_f, c_f = lax.fori_loop(0, TC, step,
                                     (h_scr[layer], c_scr[layer]),
                                     unroll=unroll)
            h_scr[layer] = h_f
            c_scr[layer] = c_f
            return h_f

        # Layer 0 reads the streamed input block; later layers read the
        # per-chunk hidden sequence kept in VMEM scratch (never hits HBM).
        x_flat = x_ref[...].reshape(TC * Bt, -1).astype(jnp.bfloat16)
        h_last = run_layer(0, x_flat, emit_y=(n_layers > 1))
        for layer in range(1, n_layers):
            y_flat = y_scr[...].reshape(TC * Bt, H).astype(jnp.bfloat16)
            h_last = run_layer(layer, y_flat,
                               emit_y=(layer < n_layers - 1))

        # Fused classifier head, written once on the final time chunk.
        @pl.when(tt == pl.num_programs(1) - 1)
        def _():
            logits = jnp.dot(h_last.astype(jnp.bfloat16), fcw_ref[...],
                             preferred_element_type=jnp.float32) + fcb_ref[...]
            o_ref[...] = jax.nn.sigmoid(logits).astype(o_ref.dtype)

    return kernel


# ------------------------------ JAX wrapper ---------------------------------

def simple_lstm_classifier(x, packed, *, t_chunk=None,
                           vmem_budget_bytes=20 * 1024 * 1024):
    """Forward pass matching SimpleLSTMClassifier. x: (B, T, input_dim) f32."""
    B, T, D = x.shape
    H = packed["hidden_dim"]
    L = packed["num_layers"]
    C = packed["num_classes"]
    G = packed["G"]
    Dp = packed["D_pad"]
    Cp = packed["C_pad"]

    Bp = _round_up(B, 8)
    b_tile = _pick_b_tile(Bp)

    fixed, per_tc = _vmem_footprint(b_tile, Dp, G, H, Cp, L)
    if t_chunk is None:
        TC = int(max(1, min((vmem_budget_bytes - fixed) // per_tc, T, 512)))
    else:
        TC = int(max(1, min(t_chunk, T)))
    Tp = _round_up(T, TC)
    needs_mask = Tp != T
    vmem_limit = int(min(max(2 * (fixed + TC * per_tc), 32 * 1024 * 1024),
                         110 * 1024 * 1024))

    if b_tile <= 32:
        unroll = min(TC, 8)
    elif b_tile <= 128:
        unroll = min(TC, 4)
    else:
        unroll = min(TC, 2)
    unroll = max(1, unroll)

    # batch_first (B, T, D) -> time-major (Tp, Bp, Dp), zero pad is inert
    # (padded time steps are masked in-kernel; padded batch rows are sliced
    # off; padded feature lanes hit zero weight rows).
    x_tm = jnp.transpose(x, (1, 0, 2))
    x_tm = jnp.pad(x_tm, ((0, Tp - T), (0, Bp - B), (0, Dp - D)))

    kernel = _make_fused_kernel(n_layers=L, H=H, G=G, T=T, TC=TC, Bt=b_tile,
                                unroll=unroll, needs_mask=needs_mask)

    grid = (Bp // b_tile, Tp // TC)
    out_p = pl.pallas_call(
        kernel,
        out_shape=jax.ShapeDtypeStruct((Bp, Cp), jnp.float32),
        grid_spec=pltpu.PrefetchScalarGridSpec(
            num_scalar_prefetch=0,
            grid=grid,
            in_specs=[
                pl.BlockSpec((TC, b_tile, Dp), lambda bb, tt: (tt, bb, 0)),
                pl.BlockSpec(packed["wih0"].shape, lambda bb, tt: (0, 0)),
                pl.BlockSpec(packed["wih_rest"].shape,
                             lambda bb, tt: (0, 0, 0)),
                pl.BlockSpec(packed["whh"].shape, lambda bb, tt: (0, 0, 0)),
                pl.BlockSpec(packed["bias"].shape, lambda bb, tt: (0, 0, 0)),
                pl.BlockSpec(packed["fc_w"].shape, lambda bb, tt: (0, 0)),
                pl.BlockSpec(packed["fc_b"].shape, lambda bb, tt: (0, 0)),
            ],
            out_specs=pl.BlockSpec((b_tile, Cp), lambda bb, tt: (bb, 0)),
            scratch_shapes=[
                pltpu.VMEM((TC, b_tile, G), jnp.float32),   # hoisted gate proj
                pltpu.VMEM((TC, b_tile, H), jnp.float32),   # inter-layer h seq
                pltpu.VMEM((L, b_tile, H), jnp.float32),    # h state per layer
                pltpu.VMEM((L, b_tile, H), jnp.float32),    # c state per layer
            ],
        ),
        compiler_params=pltpu.CompilerParams(
            dimension_semantics=("parallel", "arbitrary"),
            vmem_limit_bytes=vmem_limit),
    )(x_tm, packed["wih0"], packed["wih_rest"], packed["whh"], packed["bias"],
      packed["fc_w"], packed["fc_b"])
    return out_p[:B, :C]


# ---------------------- parameter init / repack / pad -----------------------

def init_raw_params(key, input_dim, hidden_dim, num_layers, num_classes):
    """PyTorch-layout params, uniform(-1/sqrt(H), 1/sqrt(H)), deterministic."""
    bound = 1.0 / float(hidden_dim) ** 0.5
    lstm = []
    for layer in range(num_layers):
        d_in = input_dim if layer == 0 else hidden_dim
        key, k1, k2, k3, k4 = jax.random.split(key, 5)
        w_ih = jax.random.uniform(k1, (4 * hidden_dim, d_in),
                                  jnp.float32, -bound, bound)
        w_hh = jax.random.uniform(k2, (4 * hidden_dim, hidden_dim),
                                  jnp.float32, -bound, bound)
        b_ih = jax.random.uniform(k3, (4 * hidden_dim,),
                                  jnp.float32, -bound, bound)
        b_hh = jax.random.uniform(k4, (4 * hidden_dim,),
                                  jnp.float32, -bound, bound)
        lstm.append((w_ih, w_hh, b_ih, b_hh))
    key, k5, k6 = jax.random.split(key, 3)
    fc_w = jax.random.uniform(k5, (num_classes, hidden_dim),
                              jnp.float32, -bound, bound)
    fc_b = jax.random.uniform(k6, (num_classes,), jnp.float32, -bound, bound)
    return {"lstm": lstm, "fc_w": fc_w, "fc_b": fc_b}


def prepare_params(raw, input_dim, hidden_dim, num_classes):
    """Transpose to matmul layout, keep PyTorch (i,f,g,o) packed contiguously,
    cast MXU operands to bf16, and pad only what the BlockSpecs require."""
    H = hidden_dim
    L = len(raw["lstm"])
    G = _round_up(4 * H, 128)            # packed gate width (lane padded)
    Dp = _round_up(input_dim, 128)       # x block lane dim
    Cp = _round_up(num_classes, 128)     # lane-dense output block

    def pack_w(w, rows, row_pad):
        m = jnp.zeros((row_pad, G), jnp.float32)
        m = m.at[:rows, :4 * H].set(w.T)
        return m.astype(jnp.bfloat16)

    wih0 = None
    wih_rest, whh, bias = [], [], []
    for layer, (w_ih, w_hh, b_ih, b_hh) in enumerate(raw["lstm"]):
        if layer == 0:
            wih0 = pack_w(w_ih, input_dim, Dp)
        else:
            wih_rest.append(pack_w(w_ih, H, H))
        whh.append(pack_w(w_hh, H, H))
        b = jnp.zeros((G,), jnp.float32).at[:4 * H].set(b_ih + b_hh)
        bias.append(b)
    if not wih_rest:  # dummy, never read when num_layers == 1
        wih_rest.append(jnp.zeros((H, G), jnp.bfloat16))

    fc_w = jnp.zeros((H, Cp), jnp.float32)
    fc_w = fc_w.at[:, :num_classes].set(raw["fc_w"].T).astype(jnp.bfloat16)
    fc_b = jnp.zeros((1, Cp), jnp.float32).at[0, :num_classes].set(raw["fc_b"])

    return {
        "wih0": wih0,                               # (Dp, G) bf16
        "wih_rest": jnp.stack(wih_rest),            # (max(L-1,1), H, G) bf16
        "whh": jnp.stack(whh),                      # (L, H, G) bf16
        "bias": jnp.stack(bias)[:, None, :],        # (L, 1, G) f32
        "fc_w": fc_w,                               # (H, Cp) bf16
        "fc_b": fc_b,                               # (1, Cp) f32
        "D_pad": Dp, "C_pad": Cp, "G": G,
        "hidden_dim": H, "num_layers": L, "num_classes": num_classes,
    }


# --------------------------- pure-JAX reference ------------------------------

def reference_forward(x, raw):
    """Reference using raw PyTorch-layout params and (i,f,g,o) gate order."""
    B = x.shape[0]
    seq = x
    for (w_ih, w_hh, b_ih, b_hh) in raw["lstm"]:
        H = w_hh.shape[1]
        h = jnp.zeros((B, H), jnp.float32)
        c = jnp.zeros((B, H), jnp.float32)
        outs = []
        for t in range(seq.shape[1]):
            gates = seq[:, t, :] @ w_ih.T + h @ w_hh.T + b_ih + b_hh
            i = jax.nn.sigmoid(gates[:, 0 * H:1 * H])
            f = jax.nn.sigmoid(gates[:, 1 * H:2 * H])
            g = jnp.tanh(gates[:, 2 * H:3 * H])
            o = jax.nn.sigmoid(gates[:, 3 * H:4 * H])
            c = f * c + i * g
            h = o * jnp.tanh(c)
            outs.append(h)
        seq = jnp.stack(outs, axis=1)
    return jax.nn.sigmoid(seq[:, -1, :] @ raw["fc_w"].T + raw["fc_b"])


# ----------------------------------- main ------------------------------------

if __name__ == "__main__":
    batch = 2
    seq_len = 8
    input_dim = 16
    hidden_dim = 32
    num_layers = 2
    num_classes = 4

    key = jax.random.PRNGKey(0)
    k_x, k_p = jax.random.split(key)
    x = jax.random.normal(k_x, (batch, seq_len, input_dim), jnp.float32)
    raw = init_raw_params(k_p, input_dim, hidden_dim, num_layers, num_classes)
    packed = prepare_params(raw, input_dim, hidden_dim, num_classes)

    ref = jax.block_until_ready(reference_forward(x, raw))

    # 1) Auto chunking: whole sequence in one time chunk (single grid step).
    out = jax.block_until_ready(simple_lstm_classifier(x, packed))
    assert out.shape == (batch, num_classes)
    err = float(jnp.max(jnp.abs(out - ref)))
    assert jnp.allclose(out, ref, atol=2e-2, rtol=2e-2), err  # bf16 operands

    # 2) Force a chunk size that does NOT divide T: exercises the h/c carry
    #    across grid steps and the masked padded-tail path.
    out2 = jax.block_until_ready(simple_lstm_classifier(x, packed, t_chunk=3))
    err2 = float(jnp.max(jnp.abs(out2 - ref)))
    assert jnp.allclose(out2, ref, atol=2e-2, rtol=2e-2), err2

    print("KERNEL_OK")
</pallas_src>

<mosaic_0001>
module attributes {stable_mosaic.version = 11 : i64} {
  func.func @kernel(%arg0: i32, %arg1: i32, %arg2: memref<8x8x128xf32, #tpu.memory_space<vmem>>, %arg3: memref<128x128xbf16, #tpu.memory_space<vmem>>, %arg4: memref<1x32x128xbf16, #tpu.memory_space<vmem>>, %arg5: memref<2x32x128xbf16, #tpu.memory_space<vmem>>, %arg6: memref<2x1x128xf32, #tpu.memory_space<vmem>>, %arg7: memref<32x128xbf16, #tpu.memory_space<vmem>>, %arg8: memref<1x128xf32, #tpu.memory_space<vmem>>, %arg9: memref<8x128xf32, #tpu.memory_space<vmem>>, %arg10: memref<8x8x128xf32, #tpu.memory_space<vmem>>, %arg11: memref<8x8x32xf32, #tpu.memory_space<vmem>>, %arg12: memref<2x8x32xf32, #tpu.memory_space<vmem>>, %arg13: memref<2x8x32xf32, #tpu.memory_space<vmem>>) attributes {dimension_semantics = [#tpu.dimension_semantics<parallel>, #tpu.dimension_semantics<arbitrary>], iteration_bounds = array<i64: 1, 1>, scalar_prefetch = 0 : i64, scratch_operands = 4 : i64, tpu.core_type = #tpu.core_type<tc>, window_params = [{transform_indices = @transform_0, window_bounds = array<i64: 8, 8, 128>}, {pipeline_mode = #tpu.pipeline_mode<synchronous>, transform_indices = @transform_1, window_bounds = array<i64: 128, 128>}, {pipeline_mode = #tpu.pipeline_mode<synchronous>, transform_indices = @transform_2, window_bounds = array<i64: 1, 32, 128>}, {pipeline_mode = #tpu.pipeline_mode<synchronous>, transform_indices = @transform_3, window_bounds = array<i64: 2, 32, 128>}, {pipeline_mode = #tpu.pipeline_mode<synchronous>, transform_indices = @transform_4, window_bounds = array<i64: 2, 1, 128>}, {pipeline_mode = #tpu.pipeline_mode<synchronous>, transform_indices = @transform_5, window_bounds = array<i64: 32, 128>}, {pipeline_mode = #tpu.pipeline_mode<synchronous>, transform_indices = @transform_6, window_bounds = array<i64: 1, 128>}, {transform_indices = @transform_7, window_bounds = array<i64: 8, 128>}]} {
    %c0_i32 = arith.constant 0 : i32
    %0 = arith.cmpi eq, %arg1, %c0_i32 : i32
    %1 = arith.extui %0 : i1 to i32
    %c0_i32_0 = arith.constant 0 : i32
    %2 = arith.cmpi ne, %1, %c0_i32_0 : i32
    scf.if %2 {
      %cst_145 = arith.constant 0.000000e+00 : f32
      %421 = vector.broadcast %cst_145 : f32 to vector<2x8x32xf32>
      %c0_146 = arith.constant 0 : index
      %c0_147 = arith.constant 0 : index
      %c0_148 = arith.constant 0 : index
      %422 = vector.load %arg12[%c0_146, %c0_147, %c0_148] : memref<2x8x32xf32, #tpu.memory_space<vmem>>, vector<2x8x32xf32>
      tpu.vector_store %arg12[%c0_146, %c0_147, %c0_148], %421 {strides = array<i32>} : memref<2x8x32xf32, #tpu.memory_space<vmem>>, vector<2x8x32xf32>,
      %cst_149 = arith.constant 0.000000e+00 : f32
      %423 = vector.broadcast %cst_149 : f32 to vector<2x8x32xf32>
      %c0_150 = arith.constant 0 : index
      %c0_151 = arith.constant 0 : index
      %c0_152 = arith.constant 0 : index
      %424 = vector.load %arg13[%c0_150, %c0_151, %c0_152] : memref<2x8x32xf32, #tpu.memory_space<vmem>>, vector<2x8x32xf32>
      tpu.vector_store %arg13[%c0_150, %c0_151, %c0_152], %423 {strides = array<i32>} : memref<2x8x32xf32, #tpu.memory_space<vmem>>, vector<2x8x32xf32>,
    } else {
    }
    %c0 = arith.constant 0 : index
    %c0_1 = arith.constant 0 : index
    %c0_2 = arith.constant 0 : index
    %3 = vector.load %arg2[%c0, %c0_1, %c0_2] : memref<8x8x128xf32, #tpu.memory_space<vmem>>, vector<8x8x128xf32>
    %4 = vector.shape_cast %3 : vector<8x8x128xf32> to vector<64x128xf32>
    %5 = arith.truncf %4 : vector<64x128xf32> to vector<64x128xbf16>
    %c0_3 = arith.constant 0 : index
    %c0_4 = arith.constant 0 : index
    %6 = vector.load %arg3[%c0_3, %c0_4] : memref<128x128xbf16, #tpu.memory_space<vmem>>, vector<128x128xbf16>
    %cst = arith.constant dense<0.000000e+00> : vector<64x128xf32>
    %7 = tpu.matmul %5, %6, %cst {dimension_numbers = #tpu.dot_dimension_numbers<[1], [0], [0], [1], [0, 0, 1, 1], [], []>} : vector<64x128xbf16>, vector<128x128xbf16>, vector<64x128xf32> -> vector<64x128xf32>
    %c0_5 = arith.constant 0 : index
    %c0_6 = arith.constant 0 : index
    %c0_7 = arith.constant 0 : index
    %8 = vector.load %arg6[%c0_5, %c0_6, %c0_7] : memref<2x1x128xf32, #tpu.memory_space<vmem>>, vector<1x1x128xf32>
    %9 = vector.shape_cast %8 : vector<1x1x128xf32> to vector<1x128xf32>
    %10 = vector.broadcast %9 : vector<1x128xf32> to vector<64x128xf32>
    %11 = arith.addf %7, %10 : vector<64x128xf32>
    %12 = vector.shape_cast %11 : vector<64x128xf32> to vector<8x8x128xf32>
    %c0_8 = arith.constant 0 : index
    %c0_9 = arith.constant 0 : index
    %c0_10 = arith.constant 0 : index
    %13 = vector.load %arg10[%c0_8, %c0_9, %c0_10] : memref<8x8x128xf32, #tpu.memory_space<vmem>>, vector<8x8x128xf32>
    tpu.vector_store %arg10[%c0_8, %c0_9, %c0_10], %12 {strides = array<i32>} : memref<8x8x128xf32, #tpu.memory_space<vmem>>, vector<8x8x128xf32>,
    %c0_11 = arith.constant 0 : index
    %c0_12 = arith.constant 0 : index
    %c0_13 = arith.constant 0 : index
    %14 = vector.load %arg5[%c0_11, %c0_12, %c0_13] : memref<2x32x128xbf16, #tpu.memory_space<vmem>>, vector<1x32x128xbf16>
    %15 = vector.shape_cast %14 : vector<1x32x128xbf16> to vector<32x128xbf16>
    %c0_14 = arith.constant 0 : index
    %c0_15 = arith.constant 0 : index
    %c0_16 = arith.constant 0 : index
    %16 = vector.load %arg12[%c0_14, %c0_15, %c0_16] : memref<2x8x32xf32, #tpu.memory_space<vmem>>, vector<1x8x32xf32>
    %17 = vector.shape_cast %16 : vector<1x8x32xf32> to vector<8x32xf32>
    %c0_17 = arith.constant 0 : index
    %c0_18 = arith.constant 0 : index
    %c0_19 = arith.constant 0 : index
    %18 = vector.load %arg13[%c0_17, %c0_18, %c0_19] : memref<2x8x32xf32, #tpu.memory_space<vmem>>, vector<1x8x32xf32>
    %19 = vector.shape_cast %18 : vector<1x8x32xf32> to vector<8x32xf32>
    %c0_i32_20 = arith.constant 0 : i32
    %20 = arith.index_cast %c0_i32_20 : i32 to index
    %c0_21 = arith.constant 0 : index
    %c0_22 = arith.constant 0 : index
    %21 = vector.load %arg10[%20, %c0_21, %c0_22] : memref<8x8x128xf32, #tpu.memory_space<vmem>>, vector<1x8x128xf32>
    %22 = vector.shape_cast %21 : vector<1x8x128xf32> to vector<8x128xf32>
    %23 = arith.truncf %17 : vector<8x32xf32> to vector<8x32xbf16>
    %cst_23 = arith.constant dense<0.000000e+00> : vector<8x128xf32>
    %24 = tpu.matmul %23, %15, %cst_23 {dimension_numbers = #tpu.dot_dimension_numbers<[1], [0], [0], [1], [0, 0, 1, 1], [], []>} : vector<8x32xbf16>, vector<32x128xbf16>, vector<8x128xf32> -> vector<8x128xf32>
    %25 = arith.addf %22, %24 : vector<8x128xf32>
    %26 = arith.negf %25 : vector<8x128xf32>
    %27 = math.exp %26 : vector<8x128xf32>
    %cst_24 = arith.constant 1.000000e+00 : f32
    %28 = vector.broadcast %cst_24 : f32 to vector<8x128xf32>
    %29 = arith.addf %28, %27 : vector<8x128xf32>
    %30 = arith.divf %28, %29 : vector<8x128xf32>
    %31 = math.tanh %25 : vector<8x128xf32>
    %32 = vector.extract_strided_slice %30 {offsets = [0, 0], sizes = [8, 32], strides = [1, 1]} : vector<8x128xf32> to vector<8x32xf32>
    %33 = vector.extract_strided_slice %30 {offsets = [0, 32], sizes = [8, 32], strides = [1, 1]} : vector<8x128xf32> to vector<8x32xf32>
    %34 = vector.extract_strided_slice %31 {offsets = [0, 64], sizes = [8, 32], strides = [1, 1]} : vector<8x128xf32> to vector<8x32xf32>
    %35 = vector.extract_strided_slice %30 {offsets = [0, 96], sizes = [8, 32], strides = [1, 1]} : vector<8x128xf32> to vector<8x32xf32>
    %36 = arith.mulf %33, %19 : vector<8x32xf32>
    %37 = arith.mulf %32, %34 : vector<8x32xf32>
    %38 = arith.addf %36, %37 : vector<8x32xf32>
    %39 = math.tanh %38 : vector<8x32xf32>
    %40 = arith.mulf %35, %39 : vector<8x32xf32>
    %41 = arith.index_cast %c0_i32_20 : i32 to index
    %c0_25 = arith.constant 0 : index
    %c0_26 = arith.constant 0 : index
    %42 = vector.load %arg11[%41, %c0_25, %c0_26] : memref<8x8x32xf32, #tpu.memory_space<vmem>>, vector<1x8x32xf32>
    %43 = vector.shape_cast %42 : vector<1x8x32xf32> to vector<8x32xf32>
    %44 = vector.shape_cast %40 : vector<8x32xf32> to vector<1x8x32xf32>
    tpu.vector_store %arg11[%41, %c0_25, %c0_26], %44 {strides = array<i32>} : memref<8x8x32xf32, #tpu.memory_space<vmem>>, vector<1x8x32xf32>,
    %c1_i32 = arith.constant 1 : i32
    %45 = arith.index_cast %c1_i32 : i32 to index
    %c0_27 = arith.constant 0 : index
    %c0_28 = arith.constant 0 : index
    %46 = vector.load %arg10[%45, %c0_27, %c0_28] : memref<8x8x128xf32, #tpu.memory_space<vmem>>, vector<1x8x128xf32>
    %47 = vector.shape_cast %46 : vector<1x8x128xf32> to vector<8x128xf32>
    %48 = arith.truncf %40 : vector<8x32xf32> to vector<8x32xbf16>
    %cst_29 = arith.constant dense<0.000000e+00> : vector<8x128xf32>
    %49 = tpu.matmul %48, %15, %cst_29 {dimension_numbers = #tpu.dot_dimension_numbers<[1], [0], [0], [1], [0, 0, 1, 1], [], []>} : vector<8x32xbf16>, vector<32x128xbf16>, vector<8x128xf32> -> vector<8x128xf32>
    %50 = arith.addf %47, %49 : vector<8x128xf32>
    %51 = arith.negf %50 : vector<8x128xf32>
    %52 = math.exp %51 : vector<8x128xf32>
    %cst_30 = arith.constant 1.000000e+00 : f32
    %53 = vector.broadcast %cst_30 : f32 to vector<8x128xf32>
    %54 = arith.addf %53, %52 : vector<8x128xf32>
    %55 = arith.divf %53, %54 : vector<8x128xf32>
    %56 = math.tanh %50 : vector<8x128xf32>
    %57 = vector.extract_strided_slice %55 {offsets = [0, 0], sizes = [8, 32], strides = [1, 1]} : vector<8x128xf32> to vector<8x32xf32>
    %58 = vector.extract_strided_slice %55 {offsets = [0, 32], sizes = [8, 32], strides = [1, 1]} : vector<8x128xf32> to vector<8x32xf32>
    %59 = vector.extract_strided_slice %56 {offsets = [0, 64], sizes = [8, 32], strides = [1, 1]} : vector<8x128xf32> to vector<8x32xf32>
    %60 = vector.extract_strided_slice %55 {offsets = [0, 96], sizes = [8, 32], strides = [1, 1]} : vector<8x128xf32> to vector<8x32xf32>
    %61 = arith.mulf %58, %38 : vector<8x32xf32>
    %62 = arith.mulf %57, %59 : vector<8x32xf32>
    %63 = arith.addf %61, %62 : vector<8x32xf32>
    %64 = math.tanh %63 : vector<8x32xf32>
    %65 = arith.mulf %60, %64 : vector<8x32xf32>
    %66 = arith.index_cast %c1_i32 : i32 to index
    %c0_31 = arith.constant 0 : index
    %c0_32 = arith.constant 0 : index
    %67 = vector.load %arg11[%66, %c0_31, %c0_32] : memref<8x8x32xf32, #tpu.memory_space<vmem>>, vector<1x8x32xf32>
    %68 = vector.shape_cast %67 : vector<1x8x32xf32> to vector<8x32xf32>
    %69 = vector.shape_cast %65 : vector<8x32xf32> to vector<1x8x32xf32>
    tpu.vector_store %arg11[%66, %c0_31, %c0_32], %69 {strides = array<i32>} : memref<8x8x32xf32, #tpu.memory_space<vmem>>, vector<1x8x32xf32>,
    %c2_i32 = arith.constant 2 : i32
    %70 = arith.index_cast %c2_i32 : i32 to index
    %c0_33 = arith.constant 0 : index
    %c0_34 = arith.constant 0 : index
    %71 = vector.load %arg10[%70, %c0_33, %c0_34] : memref<8x8x128xf32, #tpu.memory_space<vmem>>, vector<1x8x128xf32>
    %72 = vector.shape_cast %71 : vector<1x8x128xf32> to vector<8x128xf32>
    %73 = arith.truncf %65 : vector<8x32xf32> to vector<8x32xbf16>
    %cst_35 = arith.constant dense<0.000000e+00> : vector<8x128xf32>
    %74 = tpu.matmul %73, %15, %cst_35 {dimension_numbers = #tpu.dot_dimension_numbers<[1], [0], [0], [1], [0, 0, 1, 1], [], []>} : vector<8x32xbf16>, vector<32x128xbf16>, vector<8x128xf32> -> vector<8x128xf32>
    %75 = arith.addf %72, %74 : vector<8x128xf32>
    %76 = arith.negf %75 : vector<8x128xf32>
    %77 = math.exp %76 : vector<8x128xf32>
    %cst_36 = arith.constant 1.000000e+00 : f32
    %78 = vector.broadcast %cst_36 : f32 to vector<8x128xf32>
    %79 = arith.addf %78, %77 : vector<8x128xf32>
    %80 = arith.divf %78, %79 : vector<8x128xf32>
    %81 = math.tanh %75 : vector<8x128xf32>
    %82 = vector.extract_strided_slice %80 {offsets = [0, 0], sizes = [8, 32], strides = [1, 1]} : vector<8x128xf32> to vector<8x32xf32>
    %83 = vector.extract_strided_slice %80 {offsets = [0, 32], sizes = [8, 32], strides = [1, 1]} : vector<8x128xf32> to vector<8x32xf32>
    %84 = vector.extract_strided_slice %81 {offsets = [0, 64], sizes = [8, 32], strides = [1, 1]} : vector<8x128xf32> to vector<8x32xf32>
    %85 = vector.extract_strided_slice %80 {offsets = [0, 96], sizes = [8, 32], strides = [1, 1]} : vector<8x128xf32> to vector<8x32xf32>
    %86 = arith.mulf %83, %63 : vector<8x32xf32>
    %87 = arith.mulf %82, %84 : vector<8x32xf32>
    %88 = arith.addf %86, %87 : vector<8x32xf32>
    %89 = math.tanh %88 : vector<8x32xf32>
    %90 = arith.mulf %85, %89 : vector<8x32xf32>
    %91 = arith.index_cast %c2_i32 : i32 to index
    %c0_37 = arith.constant 0 : index
    %c0_38 = arith.constant 0 : index
    %92 = vector.load %arg11[%91, %c0_37, %c0_38] : memref<8x8x32xf32, #tpu.memory_space<vmem>>, vector<1x8x32xf32>
    %93 = vector.shape_cast %92 : vector<1x8x32xf32> to vector<8x32xf32>
    %94 = vector.shape_cast %90 : vector<8x32xf32> to vector<1x8x32xf32>
    tpu.vector_store %arg11[%91, %c0_37, %c0_38], %94 {strides = array<i32>} : memref<8x8x32xf32, #tpu.memory_space<vmem>>, vector<1x8x32xf32>,
    %c3_i32 = arith.constant 3 : i32
    %95 = arith.index_cast %c3_i32 : i32 to index
    %c0_39 = arith.constant 0 : index
    %c0_40 = arith.constant 0 : index
    %96 = vector.load %arg10[%95, %c0_39, %c0_40] : memref<8x8x128xf32, #tpu.memory_space<vmem>>, vector<1x8x128xf32>
    %97 = vector.shape_cast %96 : vector<1x8x128xf32> to vector<8x128xf32>
    %98 = arith.truncf %90 : vector<8x32xf32> to vector<8x32xbf16>
    %cst_41 = arith.constant dense<0.000000e+00> : vector<8x128xf32>
    %99 = tpu.matmul %98, %15, %cst_41 {dimension_numbers = #tpu.dot_dimension_numbers<[1], [0], [0], [1], [0, 0, 1, 1], [], []>} : vector<8x32xbf16>, vector<32x128xbf16>, vector<8x128xf32> -> vector<8x128xf32>
    %100 = arith.addf %97, %99 : vector<8x128xf32>
    %101 = arith.negf %100 : vector<8x128xf32>
    %102 = math.exp %101 : vector<8x128xf32>
    %cst_42 = arith.constant 1.000000e+00 : f32
    %103 = vector.broadcast %cst_42 : f32 to vector<8x128xf32>
    %104 = arith.addf %103, %102 : vector<8x128xf32>
    %105 = arith.divf %103, %104 : vector<8x128xf32>
    %106 = math.tanh %100 : vector<8x128xf32>
    %107 = vector.extract_strided_slice %105 {offsets = [0, 0], sizes = [8, 32], strides = [1, 1]} : vector<8x128xf32> to vector<8x32xf32>
    %108 = vector.extract_strided_slice %105 {offsets = [0, 32], sizes = [8, 32], strides = [1, 1]} : vector<8x128xf32> to vector<8x32xf32>
    %109 = vector.extract_strided_slice %106 {offsets = [0, 64], sizes = [8, 32], strides = [1, 1]} : vector<8x128xf32> to vector<8x32xf32>
    %110 = vector.extract_strided_slice %105 {offsets = [0, 96], sizes = [8, 32], strides = [1, 1]} : vector<8x128xf32> to vector<8x32xf32>
    %111 = arith.mulf %108, %88 : vector<8x32xf32>
    %112 = arith.mulf %107, %109 : vector<8x32xf32>
    %113 = arith.addf %111, %112 : vector<8x32xf32>
    %114 = math.tanh %113 : vector<8x32xf32>
    %115 = arith.mulf %110, %114 : vector<8x32xf32>
    %116 = arith.index_cast %c3_i32 : i32 to index
    %c0_43 = arith.constant 0 : index
    %c0_44 = arith.constant 0 : index
    %117 = vector.load %arg11[%116, %c0_43, %c0_44] : memref<8x8x32xf32, #tpu.memory_space<vmem>>, vector<1x8x32xf32>
    %118 = vector.shape_cast %117 : vector<1x8x32xf32> to vector<8x32xf32>
    %119 = vector.shape_cast %115 : vector<8x32xf32> to vector<1x8x32xf32>
    tpu.vector_store %arg11[%116, %c0_43, %c0_44], %119 {strides = array<i32>} : memref<8x8x32xf32, #tpu.memory_space<vmem>>, vector<1x8x32xf32>,
    %c4_i32 = arith.constant 4 : i32
    %120 = arith.index_cast %c4_i32 : i32 to index
    %c0_45 = arith.constant 0 : index
    %c0_46 = arith.constant 0 : index
    %121 = vector.load %arg10[%120, %c0_45, %c0_46] : memref<8x8x128xf32, #tpu.memory_space<vmem>>, vector<1x8x128xf32>
    %122 = vector.shape_cast %121 : vector<1x8x128xf32> to vector<8x128xf32>
    %123 = arith.truncf %115 : vector<8x32xf32> to vector<8x32xbf16>
    %cst_47 = arith.constant dense<0.000000e+00> : vector<8x128xf32>
    %124 = tpu.matmul %123, %15, %cst_47 {dimension_numbers = #tpu.dot_dimension_numbers<[1], [0], [0], [1], [0, 0, 1, 1], [], []>} : vector<8x32xbf16>, vector<32x128xbf16>, vector<8x128xf32> -> vector<8x128xf32>
    %125 = arith.addf %122, %124 : vector<8x128xf32>
    %126 = arith.negf %125 : vector<8x128xf32>
    %127 = math.exp %126 : vector<8x128xf32>
    %cst_48 = arith.constant 1.000000e+00 : f32
    %128 = vector.broadcast %cst_48 : f32 to vector<8x128xf32>
    %129 = arith.addf %128, %127 : vector<8x128xf32>
    %130 = arith.divf %128, %129 : vector<8x128xf32>
    %131 = math.tanh %125 : vector<8x128xf32>
    %132 = vector.extract_strided_slice %130 {offsets = [0, 0], sizes = [8, 32], strides = [1, 1]} : vector<8x128xf32> to vector<8x32xf32>
    %133 = vector.extract_strided_slice %130 {offsets = [0, 32], sizes = [8, 32], strides = [1, 1]} : vector<8x128xf32> to vector<8x32xf32>
    %134 = vector.extract_strided_slice %131 {offsets = [0, 64], sizes = [8, 32], strides = [1, 1]} : vector<8x128xf32> to vector<8x32xf32>
    %135 = vector.extract_strided_slice %130 {offsets = [0, 96], sizes = [8, 32], strides = [1, 1]} : vector<8x128xf32> to vector<8x32xf32>
    %136 = arith.mulf %133, %113 : vector<8x32xf32>
    %137 = arith.mulf %132, %134 : vector<8x32xf32>
    %138 = arith.addf %136, %137 : vector<8x32xf32>
    %139 = math.tanh %138 : vector<8x32xf32>
    %140 = arith.mulf %135, %139 : vector<8x32xf32>
    %141 = arith.index_cast %c4_i32 : i32 to index
    %c0_49 = arith.constant 0 : index
    %c0_50 = arith.constant 0 : index
    %142 = vector.load %arg11[%141, %c0_49, %c0_50] : memref<8x8x32xf32, #tpu.memory_space<vmem>>, vector<1x8x32xf32>
    %143 = vector.shape_cast %142 : vector<1x8x32xf32> to vector<8x32xf32>
    %144 = vector.shape_cast %140 : vector<8x32xf32> to vector<1x8x32xf32>
    tpu.vector_store %arg11[%141, %c0_49, %c0_50], %144 {strides = array<i32>} : memref<8x8x32xf32, #tpu.memory_space<vmem>>, vector<1x8x32xf32>,
    %c5_i32 = arith.constant 5 : i32
    %145 = arith.index_cast %c5_i32 : i32 to index
    %c0_51 = arith.constant 0 : index
    %c0_52 = arith.constant 0 : index
    %146 = vector.load %arg10[%145, %c0_51, %c0_52] : memref<8x8x128xf32, #tpu.memory_space<vmem>>, vector<1x8x128xf32>
    %147 = vector.shape_cast %146 : vector<1x8x128xf32> to vector<8x128xf32>
    %148 = arith.truncf %140 : vector<8x32xf32> to vector<8x32xbf16>
    %cst_53 = arith.constant dense<0.000000e+00> : vector<8x128xf32>
    %149 = tpu.matmul %148, %15, %cst_53 {dimension_numbers = #tpu.dot_dimension_numbers<[1], [0], [0], [1], [0, 0, 1, 1], [], []>} : vector<8x32xbf16>, vector<32x128xbf16>, vector<8x128xf32> -> vector<8x128xf32>
    %150 = arith.addf %147, %149 : vector<8x128xf32>
    %151 = arith.negf %150 : vector<8x128xf32>
    %152 = math.exp %151 : vector<8x128xf32>
    %cst_54 = arith.constant 1.000000e+00 : f32
    %153 = vector.broadcast %cst_54 : f32 to vector<8x128xf32>
    %154 = arith.addf %153, %152 : vector<8x128xf32>
    %155 = arith.divf %153, %154 : vector<8x128xf32>
    %156 = math.tanh %150 : vector<8x128xf32>
    %157 = vector.extract_strided_slice %155 {offsets = [0, 0], sizes = [8, 32], strides = [1, 1]} : vector<8x128xf32> to vector<8x32xf32>
    %158 = vector.extract_strided_slice %155 {offsets = [0, 32], sizes = [8, 32], strides = [1, 1]} : vector<8x128xf32> to vector<8x32xf32>
    %159 = vector.extract_strided_slice %156 {offsets = [0, 64], sizes = [8, 32], strides = [1, 1]} : vector<8x128xf32> to vector<8x32xf32>
    %160 = vector.extract_strided_slice %155 {offsets = [0, 96], sizes = [8, 32], strides = [1, 1]} : vector<8x128xf32> to vector<8x32xf32>
    %161 = arith.mulf %158, %138 : vector<8x32xf32>
    %162 = arith.mulf %157, %159 : vector<8x32xf32>
    %163 = arith.addf %161, %162 : vector<8x32xf32>
    %164 = math.tanh %163 : vector<8x32xf32>
    %165 = arith.mulf %160, %164 : vector<8x32xf32>
    %166 = arith.index_cast %c5_i32 : i32 to index
    %c0_55 = arith.constant 0 : index
    %c0_56 = arith.constant 0 : index
    %167 = vector.load %arg11[%166, %c0_55, %c0_56] : memref<8x8x32xf32, #tpu.memory_space<vmem>>, vector<1x8x32xf32>
    %168 = vector.shape_cast %167 : vector<1x8x32xf32> to vector<8x32xf32>
    %169 = vector.shape_cast %165 : vector<8x32xf32> to vector<1x8x32xf32>
    tpu.vector_store %arg11[%166, %c0_55, %c0_56], %169 {strides = array<i32>} : memref<8x8x32xf32, #tpu.memory_space<vmem>>, vector<1x8x32xf32>,
    %c6_i32 = arith.constant 6 : i32
    %170 = arith.index_cast %c6_i32 : i32 to index
    %c0_57 = arith.constant 0 : index
    %c0_58 = arith.constant 0 : index
    %171 = vector.load %arg10[%170, %c0_57, %c0_58] : memref<8x8x128xf32, #tpu.memory_space<vmem>>, vector<1x8x128xf32>
    %172 = vector.shape_cast %171 : vector<1x8x128xf32> to vector<8x128xf32>
    %173 = arith.truncf %165 : vector<8x32xf32> to vector<8x32xbf16>
    %cst_59 = arith.constant dense<0.000000e+00> : vector<8x128xf32>
    %174 = tpu.matmul %173, %15, %cst_59 {dimension_numbers = #tpu.dot_dimension_numbers<[1], [0], [0], [1], [0, 0, 1, 1], [], []>} : vector<8x32xbf16>, vector<32x128xbf16>, vector<8x128xf32> -> vector<8x128xf32>
    %175 = arith.addf %172, %174 : vector<8x128xf32>
    %176 = arith.negf %175 : vector<8x128xf32>
    %177 = math.exp %176 : vector<8x128xf32>
    %cst_60 = arith.constant 1.000000e+00 : f32
    %178 = vector.broadcast %cst_60 : f32 to vector<8x128xf32>
    %179 = arith.addf %178, %177 : vector<8x128xf32>
    %180 = arith.divf %178, %179 : vector<8x128xf32>
    %181 = math.tanh %175 : vector<8x128xf32>
    %182 = vector.extract_strided_slice %180 {offsets = [0, 0], sizes = [8, 32], strides = [1, 1]} : vector<8x128xf32> to vector<8x32xf32>
    %183 = vector.extract_strided_slice %180 {offsets = [0, 32], sizes = [8, 32], strides = [1, 1]} : vector<8x128xf32> to vector<8x32xf32>
    %184 = vector.extract_strided_slice %181 {offsets = [0, 64], sizes = [8, 32], strides = [1, 1]} : vector<8x128xf32> to vector<8x32xf32>
    %185 = vector.extract_strided_slice %180 {offsets = [0, 96], sizes = [8, 32], strides = [1, 1]} : vector<8x128xf32> to vector<8x32xf32>
    %186 = arith.mulf %183, %163 : vector<8x32xf32>
    %187 = arith.mulf %182, %184 : vector<8x32xf32>
    %188 = arith.addf %186, %187 : vector<8x32xf32>
    %189 = math.tanh %188 : vector<8x32xf32>
    %190 = arith.mulf %185, %189 : vector<8x32xf32>
    %191 = arith.index_cast %c6_i32 : i32 to index
    %c0_61 = arith.constant 0 : index
    %c0_62 = arith.constant 0 : index
    %192 = vector.load %arg11[%191, %c0_61, %c0_62] : memref<8x8x32xf32, #tpu.memory_space<vmem>>, vector<1x8x32xf32>
    %193 = vector.shape_cast %192 : vector<1x8x32xf32> to vector<8x32xf32>
    %194 = vector.shape_cast %190 : vector<8x32xf32> to vector<1x8x32xf32>
    tpu.vector_store %arg11[%191, %c0_61, %c0_62], %194 {strides = array<i32>} : memref<8x8x32xf32, #tpu.memory_space<vmem>>, vector<1x8x32xf32>,
    %c7_i32 = arith.constant 7 : i32
    %195 = arith.index_cast %c7_i32 : i32 to index
    %c0_63 = arith.constant 0 : index
    %c0_64 = arith.constant 0 : index
    %196 = vector.load %arg10[%195, %c0_63, %c0_64] : memref<8x8x128xf32, #tpu.memory_space<vmem>>, vector<1x8x128xf32>
    %197 = vector.shape_cast %196 : vector<1x8x128xf32> to vector<8x128xf32>
    %198 = arith.truncf %190 : vector<8x32xf32> to vector<8x32xbf16>
    %cst_65 = arith.constant dense<0.000000e+00> : vector<8x128xf32>
    %199 = tpu.matmul %198, %15, %cst_65 {dimension_numbers = #tpu.dot_dimension_numbers<[1], [0], [0], [1], [0, 0, 1, 1], [], []>} : vector<8x32xbf16>, vector<32x128xbf16>, vector<8x128xf32> -> vector<8x128xf32>
    %200 = arith.addf %197, %199 : vector<8x128xf32>
    %201 = arith.negf %200 : vector<8x128xf32>
    %202 = math.exp %201 : vector<8x128xf32>
    %cst_66 = arith.constant 1.000000e+00 : f32
    %203 = vector.broadcast %cst_66 : f32 to vector<8x128xf32>
    %204 = arith.addf %203, %202 : vector<8x128xf32>
    %205 = arith.divf %203, %204 : vector<8x128xf32>
    %206 = math.tanh %200 : vector<8x128xf32>
    %207 = vector.extract_strided_slice %205 {offsets = [0, 0], sizes = [8, 32], strides = [1, 1]} : vector<8x128xf32> to vector<8x32xf32>
    %208 = vector.extract_strided_slice %205 {offsets = [0, 32], sizes = [8, 32], strides = [1, 1]} : vector<8x128xf32> to vector<8x32xf32>
    %209 = vector.extract_strided_slice %206 {offsets = [0, 64], sizes = [8, 32], strides = [1, 1]} : vector<8x128xf32> to vector<8x32xf32>
    %210 = vector.extract_strided_slice %205 {offsets = [0, 96], sizes = [8, 32], strides = [1, 1]} : vector<8x128xf32> to vector<8x32xf32>
    %211 = arith.mulf %208, %188 : vector<8x32xf32>
    %212 = arith.mulf %207, %209 : vector<8x32xf32>
    %213 = arith.addf %211, %212 : vector<8x32xf32>
    %214 = math.tanh %213 : vector<8x32xf32>
    %215 = arith.mulf %210, %214 : vector<8x32xf32>
    %216 = arith.index_cast %c7_i32 : i32 to index
    %c0_67 = arith.constant 0 : index
    %c0_68 = arith.constant 0 : index
    %217 = vector.load %arg11[%216, %c0_67, %c0_68] : memref<8x8x32xf32, #tpu.memory_space<vmem>>, vector<1x8x32xf32>
    %218 = vector.shape_cast %217 : vector<1x8x32xf32> to vector<8x32xf32>
    %219 = vector.shape_cast %215 : vector<8x32xf32> to vector<1x8x32xf32>
    tpu.vector_store %arg11[%216, %c0_67, %c0_68], %219 {strides = array<i32>} : memref<8x8x32xf32, #tpu.memory_space<vmem>>, vector<1x8x32xf32>,
    %c8_i32 = arith.constant 8 : i32
    %c0_69 = arith.constant 0 : index
    %c0_70 = arith.constant 0 : index
    %c0_71 = arith.constant 0 : index
    %220 = vector.load %arg12[%c0_69, %c0_70, %c0_71] : memref<2x8x32xf32, #tpu.memory_space<vmem>>, vector<1x8x32xf32>
    %221 = vector.shape_cast %220 : vector<1x8x32xf32> to vector<8x32xf32>
    %222 = vector.shape_cast %215 : vector<8x32xf32> to vector<1x8x32xf32>
    tpu.vector_store %arg12[%c0_69, %c0_70, %c0_71], %222 {strides = array<i32>} : memref<2x8x32xf32, #tpu.memory_space<vmem>>, vector<1x8x32xf32>,
    %c0_72 = arith.constant 0 : index
    %c0_73 = arith.constant 0 : index
    %c0_74 = arith.constant 0 : index
    %223 = vector.load %arg13[%c0_72, %c0_73, %c0_74] : memref<2x8x32xf32, #tpu.memory_space<vmem>>, vector<1x8x32xf32>
    %224 = vector.shape_cast %223 : vector<1x8x32xf32> to vector<8x32xf32>
    %225 = vector.shape_cast %213 : vector<8x32xf32> to vector<1x8x32xf32>
    tpu.vector_store %arg13[%c0_72, %c0_73, %c0_74], %225 {strides = array<i32>} : memref<2x8x32xf32, #tpu.memory_space<vmem>>, vector<1x8x32xf32>,
    %c0_75 = arith.constant 0 : index
    %c0_76 = arith.constant 0 : index
    %c0_77 = arith.constant 0 : index
    %226 = vector.load %arg11[%c0_75, %c0_76, %c0_77] : memref<8x8x32xf32, #tpu.memory_space<vmem>>, vector<8x8x32xf32>
    %227 = vector.shape_cast %226 : vector<8x8x32xf32> to vector<64x32xf32>
    %228 = arith.truncf %227 : vector<64x32xf32> to vector<64x32xbf16>
    %c0_78 = arith.constant 0 : index
    %c0_79 = arith.constant 0 : index
    %c0_80 = arith.constant 0 : index
    %229 = vector.load %arg4[%c0_78, %c0_79, %c0_80] : memref<1x32x128xbf16, #tpu.memory_space<vmem>>, vector<1x32x128xbf16>
    %230 = vector.shape_cast %229 : vector<1x32x128xbf16> to vector<32x128xbf16>
    %cst_81 = arith.constant dense<0.000000e+00> : vector<64x128xf32>
    %231 = tpu.matmul %228, %230, %cst_81 {dimension_numbers = #tpu.dot_dimension_numbers<[1], [0], [0], [1], [0, 0, 1, 1], [], []>} : vector<64x32xbf16>, vector<32x128xbf16>, vector<64x128xf32> -> vector<64x128xf32>
    %c1 = arith.constant 1 : index
    %c0_82 = arith.constant 0 : index
    %c0_83 = arith.constant 0 : index
    %232 = vector.load %arg6[%c1, %c0_82, %c0_83] : memref<2x1x128xf32, #tpu.memory_space<vmem>>, vector<1x1x128xf32>
    %233 = vector.shape_cast %232 : vector<1x1x128xf32> to vector<1x128xf32>
    %234 = vector.broadcast %233 : vector<1x128xf32> to vector<64x128xf32>
    %235 = arith.addf %231, %234 : vector<64x128xf32>
    %236 = vector.shape_cast %235 : vector<64x128xf32> to vector<8x8x128xf32>
    %c0_84 = arith.constant 0 : index
    %c0_85 = arith.constant 0 : index
    %c0_86 = arith.constant 0 : index
    %237 = vector.load %arg10[%c0_84, %c0_85, %c0_86] : memref<8x8x128xf32, #tpu.memory_space<vmem>>, vector<8x8x128xf32>
    tpu.vector_store %arg10[%c0_84, %c0_85, %c0_86], %236 {strides = array<i32>} : memref<8x8x128xf32, #tpu.memory_space<vmem>>, vector<8x8x128xf32>,
    %c1_87 = arith.constant 1 : index
    %c0_88 = arith.constant 0 : index
    %c0_89 = arith.constant 0 : index
    %238 = vector.load %arg5[%c1_87, %c0_88, %c0_89] : memref<2x32x128xbf16, #tpu.memory_space<vmem>>, vector<1x32x128xbf16>
    %239 = vector.shape_cast %238 : vector<1x32x128xbf16> to vector<32x128xbf16>
    %c1_90 = arith.constant 1 : index
    %c0_91 = arith.constant 0 : index
    %c0_92 = arith.constant 0 : index
    %240 = vector.load %arg12[%c1_90, %c0_91, %c0_92] : memref<2x8x32xf32, #tpu.memory_space<vmem>>, vector<1x8x32xf32>
    %241 = vector.shape_cast %240 : vector<1x8x32xf32> to vector<8x32xf32>
    %c1_93 = arith.constant 1 : index
    %c0_94 = arith.constant 0 : index
    %c0_95 = arith.constant 0 : index
    %242 = vector.load %arg13[%c1_93, %c0_94, %c0_95] : memref<2x8x32xf32, #tpu.memory_space<vmem>>, vector<1x8x32xf32>
    %243 = vector.shape_cast %242 : vector<1x8x32xf32> to vector<8x32xf32>
    %c0_i32_96 = arith.constant 0 : i32
    %244 = arith.index_cast %c0_i32_96 : i32 to index
    %c0_97 = arith.constant 0 : index
    %c0_98 = arith.constant 0 : index
    %245 = vector.load %arg10[%244, %c0_97, %c0_98] : memref<8x8x128xf32, #tpu.memory_space<vmem>>, vector<1x8x128xf32>
    %246 = vector.shape_cast %245 : vector<1x8x128xf32> to vector<8x128xf32>
    %247 = arith.truncf %241 : vector<8x32xf32> to vector<8x32xbf16>
    %cst_99 = arith.constant dense<0.000000e+00> : vector<8x128xf32>
    %248 = tpu.matmul %247, %239, %cst_99 {dimension_numbers = #tpu.dot_dimension_numbers<[1], [0], [0], [1], [0, 0, 1, 1], [], []>} : vector<8x32xbf16>, vector<32x128xbf16>, vector<8x128xf32> -> vector<8x128xf32>
    %249 = arith.addf %246, %248 : vector<8x128xf32>
    %250 = arith.negf %249 : vector<8x128xf32>
    %251 = math.exp %250 : vector<8x128xf32>
    %cst_100 = arith.constant 1.000000e+00 : f32
    %252 = vector.broadcast %cst_100 : f32 to vector<8x128xf32>
    %253 = arith.addf %252, %251 : vector<8x128xf32>
    %254 = arith.divf %252, %253 : vector<8x128xf32>
    %255 = math.tanh %249 : vector<8x128xf32>
    %256 = vector.extract_strided_slice %254 {offsets = [0, 0], sizes = [8, 32], strides = [1, 1]} : vector<8x128xf32> to vector<8x32xf32>
    %257 = vector.extract_strided_slice %254 {offsets = [0, 32], sizes = [8, 32], strides = [1, 1]} : vector<8x128xf32> to vector<8x32xf32>
    %258 = vector.extract_strided_slice %255 {offsets = [0, 64], sizes = [8, 32], strides = [1, 1]} : vector<8x128xf32> to vector<8x32xf32>
    %259 = vector.extract_strided_slice %254 {offsets = [0, 96], sizes = [8, 32], strides = [1, 1]} : vector<8x128xf32> to vector<8x32xf32>
    %260 = arith.mulf %257, %243 : vector<8x32xf32>
    %261 = arith.mulf %256, %258 : vector<8x32xf32>
    %262 = arith.addf %260, %261 : vector<8x32xf32>
    %263 = math.tanh %262 : vector<8x32xf32>
    %264 = arith.mulf %259, %263 : vector<8x32xf32>
    %c1_i32_101 = arith.constant 1 : i32
    %265 = arith.index_cast %c1_i32_101 : i32 to index
    %c0_102 = arith.constant 0 : index
    %c0_103 = arith.constant 0 : index
    %266 = vector.load %arg10[%265, %c0_102, %c0_103] : memref<8x8x128xf32, #tpu.memory_space<vmem>>, vector<1x8x128xf32>
    %267 = vector.shape_cast %266 : vector<1x8x128xf32> to vector<8x128xf32>
    %268 = arith.truncf %264 : vector<8x32xf32> to vector<8x32xbf16>
    %cst_104 = arith.constant dense<0.000000e+00> : vector<8x128xf32>
    %269 = tpu.matmul %268, %239, %cst_104 {dimension_numbers = #tpu.dot_dimension_numbers<[1], [0], [0], [1], [0, 0, 1, 1], [], []>} : vector<8x32xbf16>, vector<32x128xbf16>, vector<8x128xf32> -> vector<8x128xf32>
    %270 = arith.addf %267, %269 : vector<8x128xf32>
    %271 = arith.negf %270 : vector<8x128xf32>
    %272 = math.exp %271 : vector<8x128xf32>
    %cst_105 = arith.constant 1.000000e+00 : f32
    %273 = vector.broadcast %cst_105 : f32 to vector<8x128xf32>
    %274 = arith.addf %273, %272 : vector<8x128xf32>
    %275 = arith.divf %273, %274 : vector<8x128xf32>
    %276 = math.tanh %270 : vector<8x128xf32>
    %277 = vector.extract_strided_slice %275 {offsets = [0, 0], sizes = [8, 32], strides = [1, 1]} : vector<8x128xf32> to vector<8x32xf32>
    %278 = vector.extract_strided_slice %275 {offsets = [0, 32], sizes = [8, 32], strides = [1, 1]} : vector<8x128xf32> to vector<8x32xf32>
    %279 = vector.extract_strided_slice %276 {offsets = [0, 64], sizes = [8, 32], strides = [1, 1]} : vector<8x128xf32> to vector<8x32xf32>
    %280 = vector.extract_strided_slice %275 {offsets = [0, 96], sizes = [8, 32], strides = [1, 1]} : vector<8x128xf32> to vector<8x32xf32>
    %281 = arith.mulf %278, %262 : vector<8x32xf32>
    %282 = arith.mulf %277, %279 : vector<8x32xf32>
    %283 = arith.addf %281, %282 : vector<8x32xf32>
    %284 = math.tanh %283 : vector<8x32xf32>
    %285 = arith.mulf %280, %284 : vector<8x32xf32>
    %c2_i32_106 = arith.constant 2 : i32
    %286 = arith.index_cast %c2_i32_106 : i32 to index
    %c0_107 = arith.constant 0 : index
    %c0_108 = arith.constant 0 : index
    %287 = vector.load %arg10[%286, %c0_107, %c0_108] : memref<8x8x128xf32, #tpu.memory_space<vmem>>, vector<1x8x128xf32>
    %288 = vector.shape_cast %287 : vector<1x8x128xf32> to vector<8x128xf32>
    %289 = arith.truncf %285 : vector<8x32xf32> to vector<8x32xbf16>
    %cst_109 = arith.constant dense<0.000000e+00> : vector<8x128xf32>
    %290 = tpu.matmul %289, %239, %cst_109 {dimension_numbers = #tpu.dot_dimension_numbers<[1], [0], [0], [1], [0, 0, 1, 1], [], []>} : vector<8x32xbf16>, vector<32x128xbf16>, vector<8x128xf32> -> vector<8x128xf32>
    %291 = arith.addf %288, %290 : vector<8x128xf32>
    %292 = arith.negf %291 : vector<8x128xf32>
    %293 = math.exp %292 : vector<8x128xf32>
    %cst_110 = arith.constant 1.000000e+00 : f32
    %294 = vector.broadcast %cst_110 : f32 to vector<8x128xf32>
    %295 = arith.addf %294, %293 : vector<8x128xf32>
    %296 = arith.divf %294, %295 : vector<8x128xf32>
    %297 = math.tanh %291 : vector<8x128xf32>
    %298 = vector.extract_strided_slice %296 {offsets = [0, 0], sizes = [8, 32], strides = [1, 1]} : vector<8x128xf32> to vector<8x32xf32>
    %299 = vector.extract_strided_slice %296 {offsets = [0, 32], sizes = [8, 32], strides = [1, 1]} : vector<8x128xf32> to vector<8x32xf32>
    %300 = vector.extract_strided_slice %297 {offsets = [0, 64], sizes = [8, 32], strides = [1, 1]} : vector<8x128xf32> to vector<8x32xf32>
    %301 = vector.extract_strided_slice %296 {offsets = [0, 96], sizes = [8, 32], strides = [1, 1]} : vector<8x128xf32> to vector<8x32xf32>
    %302 = arith.mulf %299, %283 : vector<8x32xf32>
    %303 = arith.mulf %298, %300 : vector<8x32xf32>
    %304 = arith.addf %302, %303 : vector<8x32xf32>
    %305 = math.tanh %304 : vector<8x32xf32>
    %306 = arith.mulf %301, %305 : vector<8x32xf32>
    %c3_i32_111 = arith.constant 3 : i32
    %307 = arith.index_cast %c3_i32_111 : i32 to index
    %c0_112 = arith.constant 0 : index
    %c0_113 = arith.constant 0 : index
    %308 = vector.load %arg10[%307, %c0_112, %c0_113] : memref<8x8x128xf32, #tpu.memory_space<vmem>>, vector<1x8x128xf32>
    %309 = vector.shape_cast %308 : vector<1x8x128xf32> to vector<8x128xf32>
    %310 = arith.truncf %306 : vector<8x32xf32> to vector<8x32xbf16>
    %cst_114 = arith.constant dense<0.000000e+00> : vector<8x128xf32>
    %311 = tpu.matmul %310, %239, %cst_114 {dimension_numbers = #tpu.dot_dimension_numbers<[1], [0], [0], [1], [0, 0, 1, 1], [], []>} : vector<8x32xbf16>, vector<32x128xbf16>, vector<8x128xf32> -> vector<8x128xf32>
    %312 = arith.addf %309, %311 : vector<8x128xf32>
    %313 = arith.negf %312 : vector<8x128xf32>
    %314 = math.exp %313 : vector<8x128xf32>
    %cst_115 = arith.constant 1.000000e+00 : f32
    %315 = vector.broadcast %cst_115 : f32 to vector<8x128xf32>
    %316 = arith.addf %315, %314 : vector<8x128xf32>
    %317 = arith.divf %315, %316 : vector<8x128xf32>
    %318 = math.tanh %312 : vector<8x128xf32>
    %319 = vector.extract_strided_slice %317 {offsets = [0, 0], sizes = [8, 32], strides = [1, 1]} : vector<8x128xf32> to vector<8x32xf32>
    %320 = vector.extract_strided_slice %317 {offsets = [0, 32], sizes = [8, 32], strides = [1, 1]} : vector<8x128xf32> to vector<8x32xf32>
    %321 = vector.extract_strided_slice %318 {offsets = [0, 64], sizes = [8, 32], strides = [1, 1]} : vector<8x128xf32> to vector<8x32xf32>
    %322 = vector.extract_strided_slice %317 {offsets = [0, 96], sizes = [8, 32], strides = [1, 1]} : vector<8x128xf32> to vector<8x32xf32>
    %323 = arith.mulf %320, %304 : vector<8x32xf32>
    %324 = arith.mulf %319, %321 : vector<8x32xf32>
    %325 = arith.addf %323, %324 : vector<8x32xf32>
    %326 = math.tanh %325 : vector<8x32xf32>
    %327 = arith.mulf %322, %326 : vector<8x32xf32>
    %c4_i32_116 = arith.constant 4 : i32
    %328 = arith.index_cast %c4_i32_116 : i32 to index
    %c0_117 = arith.constant 0 : index
    %c0_118 = arith.constant 0 : index
    %329 = vector.load %arg10[%328, %c0_117, %c0_118] : memref<8x8x128xf32, #tpu.memory_space<vmem>>, vector<1x8x128xf32>
    %330 = vector.shape_cast %329 : vector<1x8x128xf32> to vector<8x128xf32>
    %331 = arith.truncf %327 : vector<8x32xf32> to vector<8x32xbf16>
    %cst_119 = arith.constant dense<0.000000e+00> : vector<8x128xf32>
    %332 = tpu.matmul %331, %239, %cst_119 {dimension_numbers = #tpu.dot_dimension_numbers<[1], [0], [0], [1], [0, 0, 1, 1], [], []>} : vector<8x32xbf16>, vector<32x128xbf16>, vector<8x128xf32> -> vector<8x128xf32>
    %333 = arith.addf %330, %332 : vector<8x128xf32>
    %334 = arith.negf %333 : vector<8x128xf32>
    %335 = math.exp %334 : vector<8x128xf32>
    %cst_120 = arith.constant 1.000000e+00 : f32
    %336 = vector.broadcast %cst_120 : f32 to vector<8x128xf32>
    %337 = arith.addf %336, %335 : vector<8x128xf32>
    %338 = arith.divf %336, %337 : vector<8x128xf32>
    %339 = math.tanh %333 : vector<8x128xf32>
    %340 = vector.extract_strided_slice %338 {offsets = [0, 0], sizes = [8, 32], strides = [1, 1]} : vector<8x128xf32> to vector<8x32xf32>
    %341 = vector.extract_strided_slice %338 {offsets = [0, 32], sizes = [8, 32], strides = [1, 1]} : vector<8x128xf32> to vector<8x32xf32>
    %342 = vector.extract_strided_slice %339 {offsets = [0, 64], sizes = [8, 32], strides = [1, 1]} : vector<8x128xf32> to vector<8x32xf32>
    %343 = vector.extract_strided_slice %338 {offsets = [0, 96], sizes = [8, 32], strides = [1, 1]} : vector<8x128xf32> to vector<8x32xf32>
    %344 = arith.mulf %341, %325 : vector<8x32xf32>
    %345 = arith.mulf %340, %342 : vector<8x32xf32>
    %346 = arith.addf %344, %345 : vector<8x32xf32>
    %347 = math.tanh %346 : vector<8x32xf32>
    %348 = arith.mulf %343, %347 : vector<8x32xf32>
    %c5_i32_121 = arith.constant 5 : i32
    %349 = arith.index_cast %c5_i32_121 : i32 to index
    %c0_122 = arith.constant 0 : index
    %c0_123 = arith.constant 0 : index
    %350 = vector.load %arg10[%349, %c0_122, %c0_123] : memref<8x8x128xf32, #tpu.memory_space<vmem>>, vector<1x8x128xf32>
    %351 = vector.shape_cast %350 : vector<1x8x128xf32> to vector<8x128xf32>
    %352 = arith.truncf %348 : vector<8x32xf32> to vector<8x32xbf16>
    %cst_124 = arith.constant dense<0.000000e+00> : vector<8x128xf32>
    %353 = tpu.matmul %352, %239, %cst_124 {dimension_numbers = #tpu.dot_dimension_numbers<[1], [0], [0], [1], [0, 0, 1, 1], [], []>} : vector<8x32xbf16>, vector<32x128xbf16>, vector<8x128xf32> -> vector<8x128xf32>
    %354 = arith.addf %351, %353 : vector<8x128xf32>
    %355 = arith.negf %354 : vector<8x128xf32>
    %356 = math.exp %355 : vector<8x128xf32>
    %cst_125 = arith.constant 1.000000e+00 : f32
    %357 = vector.broadcast %cst_125 : f32 to vector<8x128xf32>
    %358 = arith.addf %357, %356 : vector<8x128xf32>
    %359 = arith.divf %357, %358 : vector<8x128xf32>
    %360 = math.tanh %354 : vector<8x128xf32>
    %361 = vector.extract_strided_slice %359 {offsets = [0, 0], sizes = [8, 32], strides = [1, 1]} : vector<8x128xf32> to vector<8x32xf32>
    %362 = vector.extract_strided_slice %359 {offsets = [0, 32], sizes = [8, 32], strides = [1, 1]} : vector<8x128xf32> to vector<8x32xf32>
    %363 = vector.extract_strided_slice %360 {offsets = [0, 64], sizes = [8, 32], strides = [1, 1]} : vector<8x128xf32> to vector<8x32xf32>
    %364 = vector.extract_strided_slice %359 {offsets = [0, 96], sizes = [8, 32], strides = [1, 1]} : vector<8x128xf32> to vector<8x32xf32>
    %365 = arith.mulf %362, %346 : vector<8x32xf32>
    %366 = arith.mulf %361, %363 : vector<8x32xf32>
    %367 = arith.addf %365, %366 : vector<8x32xf32>
    %368 = math.tanh %367 : vector<8x32xf32>
    %369 = arith.mulf %364, %368 : vector<8x32xf32>
    %c6_i32_126 = arith.constant 6 : i32
    %370 = arith.index_cast %c6_i32_126 : i32 to index
    %c0_127 = arith.constant 0 : index
    %c0_128 = arith.constant 0 : index
    %371 = vector.load %arg10[%370, %c0_127, %c0_128] : memref<8x8x128xf32, #tpu.memory_space<vmem>>, vector<1x8x128xf32>
    %372 = vector.shape_cast %371 : vector<1x8x128xf32> to vector<8x128xf32>
    %373 = arith.truncf %369 : vector<8x32xf32> to vector<8x32xbf16>
    %cst_129 = arith.constant dense<0.000000e+00> : vector<8x128xf32>
    %374 = tpu.matmul %373, %239, %cst_129 {dimension_numbers = #tpu.dot_dimension_numbers<[1], [0], [0], [1], [0, 0, 1, 1], [], []>} : vector<8x32xbf16>, vector<32x128xbf16>, vector<8x128xf32> -> vector<8x128xf32>
    %375 = arith.addf %372, %374 : vector<8x128xf32>
    %376 = arith.negf %375 : vector<8x128xf32>
    %377 = math.exp %376 : vector<8x128xf32>
    %cst_130 = arith.constant 1.000000e+00 : f32
    %378 = vector.broadcast %cst_130 : f32 to vector<8x128xf32>
    %379 = arith.addf %378, %377 : vector<8x128xf32>
    %380 = arith.divf %378, %379 : vector<8x128xf32>
    %381 = math.tanh %375 : vector<8x128xf32>
    %382 = vector.extract_strided_slice %380 {offsets = [0, 0], sizes = [8, 32], strides = [1, 1]} : vector<8x128xf32> to vector<8x32xf32>
    %383 = vector.extract_strided_slice %380 {offsets = [0, 32], sizes = [8, 32], strides = [1, 1]} : vector<8x128xf32> to vector<8x32xf32>
    %384 = vector.extract_strided_slice %381 {offsets = [0, 64], sizes = [8, 32], strides = [1, 1]} : vector<8x128xf32> to vector<8x32xf32>
    %385 = vector.extract_strided_slice %380 {offsets = [0, 96], sizes = [8, 32], strides = [1, 1]} : vector<8x128xf32> to vector<8x32xf32>
    %386 = arith.mulf %383, %367 : vector<8x32xf32>
    %387 = arith.mulf %382, %384 : vector<8x32xf32>
    %388 = arith.addf %386, %387 : vector<8x32xf32>
    %389 = math.tanh %388 : vector<8x32xf32>
    %390 = arith.mulf %385, %389 : vector<8x32xf32>
    %c7_i32_131 = arith.constant 7 : i32
    %391 = arith.index_cast %c7_i32_131 : i32 to index
    %c0_132 = arith.constant 0 : index
    %c0_133 = arith.constant 0 : index
    %392 = vector.load %arg10[%391, %c0_132, %c0_133] : memref<8x8x128xf32, #tpu.memory_space<vmem>>, vector<1x8x128xf32>
    %393 = vector.shape_cast %392 : vector<1x8x128xf32> to vector<8x128xf32>
    %394 = arith.truncf %390 : vector<8x32xf32> to vector<8x32xbf16>
    %cst_134 = arith.constant dense<0.000000e+00> : vector<8x128xf32>
    %395 = tpu.matmul %394, %239, %cst_134 {dimension_numbers = #tpu.dot_dimension_numbers<[1], [0], [0], [1], [0, 0, 1, 1], [], []>} : vector<8x32xbf16>, vector<32x128xbf16>, vector<8x128xf32> -> vector<8x128xf32>
    %396 = arith.addf %393, %395 : vector<8x128xf32>
    %397 = arith.negf %396 : vector<8x128xf32>
    %398 = math.exp %397 : vector<8x128xf32>
    %cst_135 = arith.constant 1.000000e+00 : f32
    %399 = vector.broadcast %cst_135 : f32 to vector<8x128xf32>
    %400 = arith.addf %399, %398 : vector<8x128xf32>
    %401 = arith.divf %399, %400 : vector<8x128xf32>
    %402 = math.tanh %396 : vector<8x128xf32>
    %403 = vector.extract_strided_slice %401 {offsets = [0, 0], sizes = [8, 32], strides = [1, 1]} : vector<8x128xf32> to vector<8x32xf32>
    %404 = vector.extract_strided_slice %401 {offsets = [0, 32], sizes = [8, 32], strides = [1, 1]} : vector<8x128xf32> to vector<8x32xf32>
    %405 = vector.extract_strided_slice %402 {offsets = [0, 64], sizes = [8, 32], strides = [1, 1]} : vector<8x128xf32> to vector<8x32xf32>
    %406 = vector.extract_strided_slice %401 {offsets = [0, 96], sizes = [8, 32], strides = [1, 1]} : vector<8x128xf32> to vector<8x32xf32>
    %407 = arith.mulf %404, %388 : vector<8x32xf32>
    %408 = arith.mulf %403, %405 : vector<8x32xf32>
    %409 = arith.addf %407, %408 : vector<8x32xf32>
    %410 = math.tanh %409 : vector<8x32xf32>
    %411 = arith.mulf %406, %410 : vector<8x32xf32>
    %c8_i32_136 = arith.constant 8 : i32
    %c1_137 = arith.constant 1 : index
    %c0_138 = arith.constant 0 : index
    %c0_139 = arith.constant 0 : index
    %412 = vector.load %arg12[%c1_137, %c0_138, %c0_139] : memref<2x8x32xf32, #tpu.memory_space<vmem>>, vector<1x8x32xf32>
    %413 = vector.shape_cast %412 : vector<1x8x32xf32> to vector<8x32xf32>
    %414 = vector.shape_cast %411 : vector<8x32xf32> to vector<1x8x32xf32>
    tpu.vector_store %arg12[%c1_137, %c0_138, %c0_139], %414 {strides = array<i32>} : memref<2x8x32xf32, #tpu.memory_space<vmem>>, vector<1x8x32xf32>,
    %c1_140 = arith.constant 1 : index
    %c0_141 = arith.constant 0 : index
    %c0_142 = arith.constant 0 : index
    %415 = vector.load %arg13[%c1_140, %c0_141, %c0_142] : memref<2x8x32xf32, #tpu.memory_space<vmem>>, vector<1x8x32xf32>
    %416 = vector.shape_cast %415 : vector<1x8x32xf32> to vector<8x32xf32>
    %417 = vector.shape_cast %409 : vector<8x32xf32> to vector<1x8x32xf32>
    tpu.vector_store %arg13[%c1_140, %c0_141, %c0_142], %417 {strides = array<i32>} : memref<2x8x32xf32, #tpu.memory_space<vmem>>, vector<1x8x32xf32>,
    %c0_i32_143 = arith.constant 0 : i32
    %418 = arith.cmpi eq, %arg1, %c0_i32_143 : i32
    %419 = arith.extui %418 : i1 to i32
    %c0_i32_144 = arith.constant 0 : i32
    %420 = arith.cmpi ne, %419, %c0_i32_144 : i32
    scf.if %420 {
      %421 = arith.truncf %411 : vector<8x32xf32> to vector<8x32xbf16>
      %c0_145 = arith.constant 0 : index
      %c0_146 = arith.constant 0 : index
      %422 = vector.load %arg7[%c0_145, %c0_146] : memref<32x128xbf16, #tpu.memory_space<vmem>>, vector<32x128xbf16>
      %cst_147 = arith.constant dense<0.000000e+00> : vector<8x128xf32>
      %423 = tpu.matmul %421, %422, %cst_147 {dimension_numbers = #tpu.dot_dimension_numbers<[1], [0], [0], [1], [0, 0, 1, 1], [], []>} : vector<8x32xbf16>, vector<32x128xbf16>, vector<8x128xf32> -> vector<8x128xf32>
      %c0_148 = arith.constant 0 : index
      %c0_149 = arith.constant 0 : index
      %424 = vector.load %arg8[%c0_148, %c0_149] : memref<1x128xf32, #tpu.memory_space<vmem>>, vector<1x128xf32>
      %425 = vector.broadcast %424 : vector<1x128xf32> to vector<8x128xf32>
      %426 = arith.addf %423, %425 : vector<8x128xf32>
      %427 = arith.negf %426 : vector<8x128xf32>
      %428 = math.exp %427 : vector<8x128xf32>
      %cst_150 = arith.constant 1.000000e+00 : f32
      %429 = vector.broadcast %cst_150 : f32 to vector<8x128xf32>
      %430 = arith.addf %429, %428 : vector<8x128xf32>
      %431 = arith.divf %429, %430 : vector<8x128xf32>
      %c0_151 = arith.constant 0 : index
      %c0_152 = arith.constant 0 : index
      %432 = vector.load %arg9[%c0_151, %c0_152] : memref<8x128xf32, #tpu.memory_space<vmem>>, vector<8x128xf32>
      tpu.vector_store %arg9[%c0_151, %c0_152], %431 {strides = array<i32>} : memref<8x128xf32, #tpu.memory_space<vmem>>, vector<8x128xf32>,
    } else {
    }
    return
  }
  func.func @transform_0(%arg0: i32, %arg1: i32) -> (i32, i32, i32) {
    %c0_i32 = arith.constant 0 : i32
    %c0_i32_0 = arith.constant 0 : i32
    return %arg1, %arg0, %c0_i32 : i32, i32, i32
  }
  func.func @transform_1(%arg0: i32, %arg1: i32) -> (i32, i32) {
    %c0_i32 = arith.constant 0 : i32
    %c0_i32_0 = arith.constant 0 : i32
    %c0_i32_1 = arith.constant 0 : i32
    return %c0_i32, %c0_i32_0 : i32, i32
  }
  func.func @transform_2(%arg0: i32, %arg1: i32) -> (i32, i32, i32) {
    %c0_i32 = arith.constant 0 : i32
    %c0_i32_0 = arith.constant 0 : i32
    %c0_i32_1 = arith.constant 0 : i32
    %c0_i32_2 = arith.constant 0 : i32
    return %c0_i32, %c0_i32_0, %c0_i32_1 : i32, i32, i32
  }
  func.func @transform_3(%arg0: i32, %arg1: i32) -> (i32, i32, i32) {
    %c0_i32 = arith.constant 0 : i32
    %c0_i32_0 = arith.constant 0 : i32
    %c0_i32_1 = arith.constant 0 : i32
    %c0_i32_2 = arith.constant 0 : i32
    return %c0_i32, %c0_i32_0, %c0_i32_1 : i32, i32, i32
  }
  func.func @transform_4(%arg0: i32, %arg1: i32) -> (i32, i32, i32) {
    %c0_i32 = arith.constant 0 : i32
    %c0_i32_0 = arith.constant 0 : i32
    %c0_i32_1 = arith.constant 0 : i32
    %c0_i32_2 = arith.constant 0 : i32
    return %c0_i32, %c0_i32_0, %c0_i32_1 : i32, i32, i32
  }
  func.func @transform_5(%arg0: i32, %arg1: i32) -> (i32, i32) {
    %c0_i32 = arith.constant 0 : i32
    %c0_i32_0 = arith.constant 0 : i32
    %c0_i32_1 = arith.constant 0 : i32
    return %c0_i32, %c0_i32_0 : i32, i32
  }
  func.func @transform_6(%arg0: i32, %arg1: i32) -> (i32, i32) {
    %c0_i32 = arith.constant 0 : i32
    %c0_i32_0 = arith.constant 0 : i32
    %c0_i32_1 = arith.constant 0 : i32
    return %c0_i32, %c0_i32_0 : i32, i32
  }
  func.func @transform_7(%arg0: i32, %arg1: i32) -> (i32, i32) {
    %c0_i32 = arith.constant 0 : i32
    %c0_i32_0 = arith.constant 0 : i32
    return %arg0, %c0_i32 : i32, i32
  }
}

</mosaic_0001>

<llo_original>
// kernel: tpu_custom_call.1
$region0: #{tpu_custom_call.1}
  #allocation0 [shape = 'u32[]', space=smem, size = 0x4, offset = 0x4, fixed_abs, tag = 'smem constant byte address 0x4 - core index']
  #allocation1 [shape = 'u32[144,128]{1,0:T(1,128)}', space=vmem, size = 0x12000, scoped, tag = 'internal scratch']
  #allocation2 [shape = 'f32[8,8,128]{2,1,0:T(8,128)}', space=vmem, size = 0x8000, scoped, tag = 'scratch operand']
  #allocation3 [shape = 'f32[8,8,32]{2,1,0:T(8,128)}', space=vmem, size = 0x8000, scoped, tag = 'scratch operand']
  #allocation4 [shape = 'f32[2,8,32]{2,1,0:T(8,128)}', space=vmem, size = 0x2000, scoped, tag = 'scratch operand']
  #allocation5 [shape = 'f32[2,8,32]{2,1,0:T(8,128)}', space=vmem, size = 0x2000, scoped, tag = 'scratch operand']
  %s0 = inlined_call_operand.hbm [shape: f32[8,8,128], index: 0, kind: input, shape index: {}]
  %s1 = inlined_call_operand.hbm [shape: bf16[128,128], index: 1, kind: input, shape index: {}]
  %s2 = inlined_call_operand.hbm [shape: bf16[1,32,128], index: 2, kind: input, shape index: {}]
  %s3 = inlined_call_operand.hbm [shape: bf16[2,32,128], index: 3, kind: input, shape index: {}]
  %s4 = inlined_call_operand.vmem [shape: f32[2,1,128], index: 4, kind: input, shape index: {}]
  %s5 = inlined_call_operand.vmem [shape: bf16[32,128], index: 5, kind: input, shape index: {}]
  %s6 = inlined_call_operand.vmem [shape: f32[1,128], index: 6, kind: input, shape index: {}]
  %s7 = inlined_call_operand.hbm [shape: f32[8,128], index: 7, kind: output, shape index: {}]
  %s8 = sld [smem:[#allocation0]]
  $region62: #{tpu_custom_call.1} parent=0
    _
  %s10 = ssub.s32 1, %s8
  %s11 = scalar_select 0, %s10, %s8
  $region1: #{tpu_custom_call.1} parent=0
    #allocation6 [shape = 'u8[32768]{0}', space=vmem, size = 0x8000, scoped, tag = 'input window, operand 0, single buffered']
    #allocation7 [shape = 's32[1]{0}', space=sflag, size = 0x4, scoped, tag = 'scoped memory for tpu_custom_call.1']
    #allocation8 [shape = 's32[1]{0}', space=sflag, size = 0x4, scoped, tag = 'scoped memory for tpu_custom_call.1']
    #allocation9 [shape = 'u8[32768]{0}', space=vmem, size = 0x8000, scoped, tag = 'input window, operand 1, single buffered']
    #allocation10 [shape = 's32[1]{0}', space=sflag, size = 0x4, scoped, tag = 'scoped memory for tpu_custom_call.1']
    #allocation11 [shape = 'u8[8192]{0}', space=vmem, size = 0x2000, scoped, tag = 'input window, operand 2, single buffered']
    #allocation12 [shape = 'u8[16384]{0}', space=vmem, size = 0x4000, scoped, tag = 'input window, operand 3, single buffered']
    #allocation13 [shape = 's32[1]{0}', space=sflag, size = 0x4, scoped, tag = 'scoped memory for tpu_custom_call.1']
    #allocation14 [shape = 'u8[4096]{0}', space=vmem, size = 0x1000, scoped, tag = 'output window, operand 0, single buffered']
    %12 = vsyncpa [#allocation7], 0
    %13 = vsyncpa [#allocation10], 0
    %14 = vsyncpa [#allocation13], 0
    %15 = vsyncpa [#allocation8], 0
    // Predicated region
    $region2: #{tpu_custom_call.1} parent=1 // pred_check
      _
    $region3: #{tpu_custom_call.1} parent=1 // pred_check_branch
      %17 = sbr.rel (0) target = $region5
    $region4: #{tpu_custom_call.1} parent=1 // pred_region
      %s19 = ssub.s32 1024, 1024
      %20 = vsyncadd [#allocation7], %s19
      %s21 = sshll.u32 [#allocation6], 4
      %s22 = int_to_ptr.vmem [resolvable:$true] %s21
      %27 = dma.hbm_to_vmem [thread:$0]  %s0, 1024, %s22, [#allocation7], 128, 128, 8
    $region5: #{tpu_custom_call.1} parent=1 // pred_fallthru
      _
    // Predicated region
    $region6: #{tpu_custom_call.1} parent=1 // pred_check
      _
    $region7: #{tpu_custom_call.1} parent=1 // pred_check_branch
      %29 = sbr.rel (0) target = $region9
    $region8: #{tpu_custom_call.1} parent=1 // pred_region
      %s31 = ssub.s32 1024, 1024
      %32 = vsyncadd [#allocation10], %s31
      %s33 = sshll.u32 [#allocation9], 4
      %s34 = int_to_ptr.vmem [resolvable:$true] %s33
      %39 = dma.hbm_to_vmem [thread:$0]  %s1, 1024, %s34, [#allocation10], 64, 64, 4
    $region9: #{tpu_custom_call.1} parent=1 // pred_fallthru
      _
    // Predicated region
    $region10: #{tpu_custom_call.1} parent=1 // pred_check
      _
    $region11: #{tpu_custom_call.1} parent=1 // pred_check_branch
      %41 = sbr.rel (0) target = $region13
    $region12: #{tpu_custom_call.1} parent=1 // pred_region
      %s43 = ssub.s32 256, 256
      %44 = vsyncadd [#allocation10], %s43
      %s45 = sshll.u32 [#allocation11], 4
      %s46 = int_to_ptr.vmem [resolvable:$true] %s45
      %51 = dma.hbm_to_vmem [thread:$0]  %s2, 256, %s46, [#allocation10], 64, 64, 4
    $region13: #{tpu_custom_call.1} parent=1 // pred_fallthru
      _
    // Predicated region
    $region14: #{tpu_custom_call.1} parent=1 // pred_check
      _
    $region15: #{tpu_custom_call.1} parent=1 // pred_check_branch
      %53 = sbr.rel (0) target = $region17
    $region16: #{tpu_custom_call.1} parent=1 // pred_region
      %s55 = ssub.s32 512, 512
      %56 = vsyncadd [#allocation13], %s55
      %s57 = sshll.u32 [#allocation12], 4
      %s58 = int_to_ptr.vmem [resolvable:$true] %s57
      %63 = dma.hbm_to_vmem [thread:$0]  %s3, 512, %s58, [#allocation13], 64, 64, 4
    $region17: #{tpu_custom_call.1} parent=1 // pred_fallthru
      _
    // Predicated region
    $region18: #{tpu_custom_call.1} parent=1 // pred_check
      _
    $region19: #{tpu_custom_call.1} parent=1 // pred_check_branch
      %65 = sbr.rel (0) target = $region21
    $region20: #{tpu_custom_call.1} parent=1 // pred_region
      _
    $region21: #{tpu_custom_call.1} parent=1 // pred_fallthru
      _
    // Predicated region
    $region22: #{tpu_custom_call.1} parent=1 // pred_check
      _
    $region23: #{tpu_custom_call.1} parent=1 // pred_check_branch
      %67 = sbr.rel (0) target = $region25
    $region24: #{tpu_custom_call.1} parent=1 // pred_region
      _
    $region25: #{tpu_custom_call.1} parent=1 // pred_fallthru
      _
    // Predicated region
    $region26: #{tpu_custom_call.1} parent=1 // pred_check
      _
    $region27: #{tpu_custom_call.1} parent=1 // pred_check_branch
      %69 = sbr.rel (0) target = $region29
    $region28: #{tpu_custom_call.1} parent=1 // pred_region
      _
    $region29: #{tpu_custom_call.1} parent=1 // pred_fallthru
      _
    // Predicated region
    $region30: #{tpu_custom_call.1} parent=1 // pred_check
      _
    $region31: #{tpu_custom_call.1} parent=1 // pred_check_branch
      %71 = sbr.rel (0) target = $region33
    $region32: #{tpu_custom_call.1} parent=1 // pred_region
      %72 = dma.done [#allocation7], 1024
    $region33: #{tpu_custom_call.1} parent=1 // pred_fallthru
      _
    // Predicated region
    $region34: #{tpu_custom_call.1} parent=1 // pred_check
      _
    $region35: #{tpu_custom_call.1} parent=1 // pred_check_branch
      %74 = sbr.rel (0) target = $region37
    $region36: #{tpu_custom_call.1} parent=1 // pred_region
      %75 = dma.done [#allocation10], 1024
    $region37: #{tpu_custom_call.1} parent=1 // pred_fallthru
      _
    // Predicated region
    $region38: #{tpu_custom_call.1} parent=1 // pred_check
      _
    $region39: #{tpu_custom_call.1} parent=1 // pred_check_branch
      %77 = sbr.rel (0) target = $region41
    $region40: #{tpu_custom_call.1} parent=1 // pred_region
      %78 = dma.done [#allocation10], 256
    $region41: #{tpu_custom_call.1} parent=1 // pred_fallthru
      _
    // Predicated region
    $region42: #{tpu_custom_call.1} parent=1 // pred_check
      _
    $region43: #{tpu_custom_call.1} parent=1 // pred_check_branch
      %80 = sbr.rel (0) target = $region45
    $region44: #{tpu_custom_call.1} parent=1 // pred_region
      %81 = dma.done [#allocation13], 512
    $region45: #{tpu_custom_call.1} parent=1 // pred_fallthru
      _
    %p83 = scmp.eq.s32.totalorder 0, 0
    // Predicated region
    $region46: #{tpu_custom_call.1} parent=1 // pred_check
      %p84 = pneg %p83
    $region47: #{tpu_custom_call.1} parent=1 // pred_check_branch
      %86 = sbr.rel (%p84) target = $region49
    $region48: #{tpu_custom_call.1} parent=1 // pred_region
      %vm87 = vcmask 261120
      %88 = vst.msk [vmem:[#allocation4] sm:$0xff] %vm87, 0.0
      %89 = vst.msk [vmem:[#allocation4 + $0x8] sm:$0xff] %vm87, 0.0
      %90 = vst.msk [vmem:[#allocation5] sm:$0xff] %vm87, 0.0
      %91 = vst.msk [vmem:[#allocation5 + $0x8] sm:$0xff] %vm87, 0.0
    $region49: #{tpu_custom_call.1} parent=1 // pred_fallthru
      _
    %v92 = vld [vmem:[#allocation6] sm:$0xff]
    %v93 = vld [vmem:[#allocation6 + $0x8] sm:$0xff]
    %v94 = vld [vmem:[#allocation6 + $0x10] sm:$0xff]
    %v95 = vld [vmem:[#allocation6 + $0x18] sm:$0xff]
    %v96 = vld [vmem:[#allocation6 + $0x20] sm:$0xff]
    %v97 = vld [vmem:[#allocation6 + $0x28] sm:$0xff]
    %v98 = vld [vmem:[#allocation6 + $0x30] sm:$0xff]
    %v99 = vld [vmem:[#allocation6 + $0x38] sm:$0xff]
    %v100 = vpack.c.bf16 %v93, %v92
    %v101 = vpack.c.bf16 %v95, %v94
    %v102 = vpack.c.bf16 %v97, %v96
    %v103 = vpack.c.bf16 %v99, %v98
    %v104 = vld [vmem:[#allocation9] sm:$0xf]
    %v105 = vld [vmem:[#allocation9 + $0x4] sm:$0xf]
    %v106 = vld [vmem:[#allocation9 + $0x8] sm:$0xf]
    %v107 = vld [vmem:[#allocation9 + $0xc] sm:$0xf]
    %v108 = vld [vmem:[#allocation9 + $0x10] sm:$0xf]
    %v109 = vld [vmem:[#allocation9 + $0x14] sm:$0xf]
    %v110 = vld [vmem:[#allocation9 + $0x18] sm:$0xf]
    %v111 = vld [vmem:[#allocation9 + $0x1c] sm:$0xf]
    %v112 = vld [vmem:[#allocation9 + $0x20] sm:$0xf]
    %v113 = vld [vmem:[#allocation9 + $0x24] sm:$0xf]
    %v114 = vld [vmem:[#allocation9 + $0x28] sm:$0xf]
    %v115 = vld [vmem:[#allocation9 + $0x2c] sm:$0xf]
    %v116 = vld [vmem:[#allocation9 + $0x30] sm:$0xf]
    %v117 = vld [vmem:[#allocation9 + $0x34] sm:$0xf]
    %v118 = vld [vmem:[#allocation9 + $0x38] sm:$0xf]
    %v119 = vld [vmem:[#allocation9 + $0x3c] sm:$0xf]
    %v120 = vld [vmem:[%s4] sm:$0x1]
    %v122 = vlaneseq
    %v123 = vshrl.u32 %v122, 7
    %v124 = vsub.s32 0, %v123
    %v125 = vrot.slane %v120, %v124
    %v143 = vunpack.c.l.b16 %v104
    %v144 = vunpack.c.l.b16 %v105
    %v145 = vunpack.c.l.b16 %v106
    %v146 = vunpack.c.l.b16 %v107
    %v147 = vunpack.c.l.b16 %v108
    %v148 = vunpack.c.l.b16 %v109
    %v149 = vunpack.c.l.b16 %v110
    %v150 = vunpack.c.l.b16 %v111
    %v151 = vunpack.c.l.b16 %v112
    %v152 = vunpack.c.l.b16 %v113
    %v153 = vunpack.c.l.b16 %v114
    %v154 = vunpack.c.l.b16 %v115
    %v155 = vunpack.c.l.b16 %v116
    %v156 = vunpack.c.l.b16 %v117
    %v157 = vunpack.c.l.b16 %v118
    %v158 = vunpack.c.l.b16 %v119
    %v159 = vpack.c.b16 %v144, %v143
    %v160 = vpack.c.b16 %v146, %v145
    %v161 = vpack.c.b16 %v148, %v147
    %v162 = vpack.c.b16 %v150, %v149
    %v163 = vpack.c.b16 %v152, %v151
    %v164 = vpack.c.b16 %v154, %v153
    %v165 = vpack.c.b16 %v156, %v155
    %v166 = vpack.c.b16 %v158, %v157
    %175 = vmatprep.subr.bf16.mxu0 0
    %176 = vmatpush1.bf16.msra.mxu0 %v159
    %177 = vmatprep.subr.bf16.mxu0 0
    %178 = vmatpush1.bf16.msra.mxu0 %v160
    %179 = vmatprep.subr.bf16.mxu0 0
    %180 = vmatpush1.bf16.msra.mxu0 %v161
    %181 = vmatprep.subr.bf16.mxu0 0
    %182 = vmatpush1.bf16.msra.mxu0 %v162
    %183 = vmatprep.subr.bf16.mxu0 0
    %184 = vmatpush1.bf16.msra.mxu0 %v163
    %185 = vmatprep.subr.bf16.mxu0 0
    %186 = vmatpush1.bf16.msra.mxu0 %v164
    %187 = vmatprep.subr.bf16.mxu0 0
    %188 = vmatpush1.bf16.msra.mxu0 %v165
    %189 = vmatprep.subr.bf16.mxu0 0
    %190 = vmatpush1.bf16.msra.mxu0 %v166
    %191 = vmatprep.subr.bf16.mxu0 0
    %192 = vmatpush1.bf16.msra.mxu0 0
    %193 = vmatprep.subr.bf16.mxu0 0
    %194 = vmatpush1.bf16.msra.mxu0 0
    %195 = vmatprep.subr.bf16.mxu0 0
    %196 = vmatpush1.bf16.msra.mxu0 0
    %197 = vmatprep.subr.bf16.mxu0 0
    %198 = vmatpush1.bf16.msra.mxu0 0
    %199 = vmatprep.subr.bf16.mxu0 0
    %200 = vmatpush1.bf16.msra.mxu0 0
    %201 = vmatprep.subr.bf16.mxu0 0
    %202 = vmatpush1.bf16.msra.mxu0 0
    %203 = vmatprep.subr.bf16.mxu0 0
    %204 = vmatpush1.bf16.msra.mxu0 0
    %205 = vmatprep.subr.bf16.mxu0 0
    %206 = vmatpush1.bf16.msra.mxu0 0
    %207 = vmatprep.mubr.bf16.mxu0 0
    %208 = vmatmul.mubr.bf16.gmra.mrb[0].mxu0 %v100
    %v209 = vpop.f32.mrb[0].mxu0
    %v210 = vadd.f32 %v125, %v209
    %v211 = vpop.f32.mrb[0].mxu0
    %v212 = vpop.f32.mrb[0].mxu0
    %v213 = vadd.f32 %v125, %v212
    %v214 = vpop.f32.mrb[0].mxu0
    %215 = vmatprep.mubr.bf16.mxu0 0
    %216 = vmatmul.mubr.bf16.gmra.mrb[0].mxu0 %v101
    %v217 = vpop.f32.mrb[0].mxu0
    %v218 = vadd.f32 %v125, %v217
    %v219 = vpop.f32.mrb[0].mxu0
    %v220 = vpop.f32.mrb[0].mxu0
    %v221 = vadd.f32 %v125, %v220
    %v222 = vpop.f32.mrb[0].mxu0
    %223 = vmatprep.mubr.bf16.mxu0 0
    %224 = vmatmul.mubr.bf16.gmra.mrb[0].mxu0 %v102
    %v225 = vpop.f32.mrb[0].mxu0
    %v226 = vadd.f32 %v125, %v225
    %v227 = vpop.f32.mrb[0].mxu0
    %v228 = vpop.f32.mrb[0].mxu0
    %v229 = vadd.f32 %v125, %v228
    %v230 = vpop.f32.mrb[0].mxu0
    %231 = vmatprep.mubr.bf16.mxu0 0
    %232 = vmatmul.mubr.bf16.gmra.mrb[0].mxu0 %v103
    %v233 = vpop.f32.mrb[0].mxu0
    %v234 = vadd.f32 %v125, %v233
    %v235 = vpop.f32.mrb[0].mxu0
    %v236 = vpop.f32.mrb[0].mxu0
    %v237 = vadd.f32 %v125, %v236
    %v238 = vpop.f32.mrb[0].mxu0
    %239 = vdwg.mxu0
    %240 = vst [vmem:[#allocation2] sm:$0xff] %v210
    %241 = vst [vmem:[#allocation2 + $0x8] sm:$0xff] %v213
    %242 = vst [vmem:[#allocation2 + $0x10] sm:$0xff] %v218
    %243 = vst [vmem:[#allocation2 + $0x18] sm:$0xff] %v221
    %244 = vst [vmem:[#allocation2 + $0x20] sm:$0xff] %v226
    %245 = vst [vmem:[#allocation2 + $0x28] sm:$0xff] %v229
    %246 = vst [vmem:[#allocation2 + $0x30] sm:$0xff] %v234
    %247 = vst [vmem:[#allocation2 + $0x38] sm:$0xff] %v237
    %v248 = vld [vmem:[#allocation12] sm:$0xf]
    %v249 = vld [vmem:[#allocation12 + $0x4] sm:$0xf]
    %v250 = vld [vmem:[#allocation12 + $0x8] sm:$0xf]
    %v251 = vld [vmem:[#allocation12 + $0xc] sm:$0xf]
    %v252 = vld [vmem:[#allocation4] sm:$0xff]
    %v253 = vld [vmem:[#allocation5] sm:$0xff]
    %v254 = vld [vmem:[#allocation2] sm:$0xff]
    %v255 = vpack.c.bf16 %v252, %v252
    %v260 = vunpack.c.l.b16 %v248
    %v261 = vunpack.c.l.b16 %v249
    %v262 = vunpack.c.l.b16 %v250
    %v263 = vunpack.c.l.b16 %v251
    %v264 = vpack.c.b16 %v261, %v260
    %v265 = vpack.c.b16 %v263, %v262
    %vm268 = vcmask 261120
    %v270 = vsel %vm268, %v255, 0
    %272 = vmatprep.subr.bf16.mxu0 0
    %273 = vmatpush1.bf16.msra.mxu0 %v264
    %274 = vmatprep.subr.bf16.mxu0 0
    %275 = vmatpush1.bf16.msra.mxu0 %v265
    %276 = vmatprep.subr.bf16.mxu0 0
    %277 = vmatpush1.bf16.msra.mxu0 0
    %278 = vmatprep.subr.bf16.mxu0 0
    %279 = vmatpush1.bf16.msra.mxu0 0
    %280 = vmatprep.subr.bf16.mxu0 0
    %281 = vmatpush1.bf16.msra.mxu0 0
    %282 = vmatprep.subr.bf16.mxu0 0
    %283 = vmatpush1.bf16.msra.mxu0 0
    %284 = vmatprep.subr.bf16.mxu0 0
    %285 = vmatpush1.bf16.msra.mxu0 0
    %286 = vmatprep.subr.bf16.mxu0 0
    %287 = vmatpush1.bf16.msra.mxu0 0
    %288 = vmatprep.subr.bf16.mxu0 0
    %289 = vmatpush1.bf16.msra.mxu0 0
    %290 = vmatprep.subr.bf16.mxu0 0
    %291 = vmatpush1.bf16.msra.mxu0 0
    %292 = vmatprep.subr.bf16.mxu0 0
    %293 = vmatpush1.bf16.msra.mxu0 0
    %294 = vmatprep.subr.bf16.mxu0 0
    %295 = vmatpush1.bf16.msra.mxu0 0
    %296 = vmatprep.subr.bf16.mxu0 0
    %297 = vmatpush1.bf16.msra.mxu0 0
    %298 = vmatprep.subr.bf16.mxu0 0
    %299 = vmatpush1.bf16.msra.mxu0 0
    %300 = vmatprep.subr.bf16.mxu0 0
    %301 = vmatpush1.bf16.msra.mxu0 0
    %302 = vmatprep.subr.bf16.mxu0 0
    %303 = vmatpush1.bf16.msra.mxu0 0
    %304 = vmatprep.mubr.bf16.mxu0 0
    %305 = vmatmul.mubr.bf16.gmra.mrb[0].mxu0 %v270
    %v306 = vpop.f32.mrb[0].mxu0
    %v307 = vadd.f32 0.0, %v306
    %v308 = vpop.f32.mrb[0].mxu0
    %v309 = vpop.f32.mrb[0].mxu0
    %v310 = vpop.f32.mrb[0].mxu0
    %311 = vdwg.mxu0
    %v312 = vadd.f32 %v254, %v307
    %v313 = vxor.u32 %v312, 2147483648
    %v314 = vmul.f32 %v313, 1.442695
    %v315 = vpow.pop %v314
    %v316 = vadd.f32 %v315, 1.0
    %v317 = vrcp.pop %v316
    %v318 = vmul.f32 1.0, %v317
    %v319 = vtanh.pop %v312
    %321 = vrot.lane.b32.xlu0 %v253, 32
    %v322 = vpop.permute.xlu0 %321
    %v324 = vmul.f32 %v318, %v322
    %326 = vrot.lane.b32.xlu0 %v319, 64
    %v327 = vpop.permute.xlu0 %326
    %v329 = vmul.f32 %v318, %v327
    %331 = vrot.lane.b32.xlu0 %v329, 32
    %v332 = vpop.permute.xlu0 %331
    %v334 = vadd.f32 %v324, %v332
    %v335 = vtanh.pop %v334
    %337 = vrot.lane.b32.xlu0 %v335, 64
    %v338 = vpop.permute.xlu0 %337
    %v340 = vmul.f32 %v318, %v338
    %342 = vrot.lane.b32.xlu0 %v340, 32
    %v343 = vpop.permute.xlu0 %342
    %345 = vst.msk [vmem:[#allocation3] sm:$0xff] %vm268, %v343
    %s346 = scalar_lea.vmem [#allocation2], 8
    %v347 = vld [vmem:[%s346] sm:$0xff]
    %v348 = vpack.c.bf16 %v340, %v340
    %350 = vrot.lane.b32.xlu0 %v348, 32
    %v351 = vpop.permute.xlu0 %350
    %v353 = vsel %vm268, %v351, 0
    %355 = vmatprep.subr.bf16.mxu0 0
    %356 = vmatpush1.bf16.msra.mxu0 %v264
    %357 = vmatprep.subr.bf16.mxu0 0
    %358 = vmatpush1.bf16.msra.mxu0 %v265
    %359 = vmatprep.subr.bf16.mxu0 0
    %360 = vmatpush1.bf16.msra.mxu0 0
    %361 = vmatprep.subr.bf16.mxu0 0
    %362 = vmatpush1.bf16.msra.mxu0 0
    %363 = vmatprep.subr.bf16.mxu0 0
    %364 = vmatpush1.bf16.msra.mxu0 0
    %365 = vmatprep.subr.bf16.mxu0 0
    %366 = vmatpush1.bf16.msra.mxu0 0
    %367 = vmatprep.subr.bf16.mxu0 0
    %368 = vmatpush1.bf16.msra.mxu0 0
    %369 = vmatprep.subr.bf16.mxu0 0
    %370 = vmatpush1.bf16.msra.mxu0 0
    %371 = vmatprep.subr.bf16.mxu0 0
    %372 = vmatpush1.bf16.msra.mxu0 0
    %373 = vmatprep.subr.bf16.mxu0 0
    %374 = vmatpush1.bf16.msra.mxu0 0
    %375 = vmatprep.subr.bf16.mxu0 0
    %376 = vmatpush1.bf16.msra.mxu0 0
    %377 = vmatprep.subr.bf16.mxu0 0
    %378 = vmatpush1.bf16.msra.mxu0 0
    %379 = vmatprep.subr.bf16.mxu0 0
    %380 = vmatpush1.bf16.msra.mxu0 0
    %381 = vmatprep.subr.bf16.mxu0 0
    %382 = vmatpush1.bf16.msra.mxu0 0
    %383 = vmatprep.subr.bf16.mxu0 0
    %384 = vmatpush1.bf16.msra.mxu0 0
    %385 = vmatprep.subr.bf16.mxu0 0
    %386 = vmatpush1.bf16.msra.mxu0 0
    %387 = vmatprep.mubr.bf16.mxu0 0
    %388 = vmatmul.mubr.bf16.gmra.mrb[0].mxu0 %v353
    %v389 = vpop.f32.mrb[0].mxu0
    %v390 = vadd.f32 0.0, %v389
    %v391 = vpop.f32.mrb[0].mxu0
    %v392 = vpop.f32.mrb[0].mxu0
    %v393 = vpop.f32.mrb[0].mxu0
    %394 = vdwg.mxu0
    %v395 = vadd.f32 %v347, %v390
    %v396 = vxor.u32 %v395, 2147483648
    %v397 = vmul.f32 %v396, 1.442695
    %v398 = vpow.pop %v397
    %v399 = vadd.f32 %v398, 1.0
    %v400 = vrcp.pop %v399
    %v401 = vmul.f32 1.0, %v400
    %v402 = vtanh.pop %v395
    %v403 = vmul.f32 %v401, %v334
    %405 = vrot.lane.b32.xlu0 %v402, 64
    %v406 = vpop.permute.xlu0 %405
    %v408 = vmul.f32 %v401, %v406
    %410 = vrot.lane.b32.xlu0 %v408, 32
    %v411 = vpop.permute.xlu0 %410
    %v413 = vadd.f32 %v403, %v411
    %v414 = vtanh.pop %v413
    %416 = vrot.lane.b32.xlu0 %v414, 64
    %v417 = vpop.permute.xlu0 %416
    %v419 = vmul.f32 %v401, %v417
    %421 = vrot.lane.b32.xlu0 %v419, 32
    %v422 = vpop.permute.xlu0 %421
    %s424 = scalar_lea.vmem [#allocation3], 8
    %425 = vst.msk [vmem:[%s424] sm:$0xff] %vm268, %v422
    %s426 = scalar_lea.vmem [#allocation2], 16
    %v427 = vld [vmem:[%s426] sm:$0xff]
    %v428 = vpack.c.bf16 %v419, %v419
    %430 = vrot.lane.b32.xlu0 %v428, 32
    %v431 = vpop.permute.xlu0 %430
    %v433 = vsel %vm268, %v431, 0
    %435 = vmatprep.subr.bf16.mxu0 0
    %436 = vmatpush1.bf16.msra.mxu0 %v264
    %437 = vmatprep.subr.bf16.mxu0 0
    %438 = vmatpush1.bf16.msra.mxu0 %v265
    %439 = vmatprep.subr.bf16.mxu0 0
    %440 = vmatpush1.bf16.msra.mxu0 0
    %441 = vmatprep.subr.bf16.mxu0 0
    %442 = vmatpush1.bf16.msra.mxu0 0
    %443 = vmatprep.subr.bf16.mxu0 0
    %444 = vmatpush1.bf16.msra.mxu0 0
    %445 = vmatprep.subr.bf16.mxu0 0
    %446 = vmatpush1.bf16.msra.mxu0 0
    %447 = vmatprep.subr.bf16.mxu0 0
    %448 = vmatpush1.bf16.msra.mxu0 0
    %449 = vmatprep.subr.bf16.mxu0 0
    %450 = vmatpush1.bf16.msra.mxu0 0
    %451 = vmatprep.subr.bf16.mxu0 0
    %452 = vmatpush1.bf16.msra.mxu0 0
    %453 = vmatprep.subr.bf16.mxu0 0
    %454 = vmatpush1.bf16.msra.mxu0 0
    %455 = vmatprep.subr.bf16.mxu0 0
    %456 = vmatpush1.bf16.msra.mxu0 0
    %457 = vmatprep.subr.bf16.mxu0 0
    %458 = vmatpush1.bf16.msra.mxu0 0
    %459 = vmatprep.subr.bf16.mxu0 0
    %460 = vmatpush1.bf16.msra.mxu0 0
    %461 = vmatprep.subr.bf16.mxu0 0
    %462 = vmatpush1.bf16.msra.mxu0 0
    %463 = vmatprep.subr.bf16.mxu0 0
    %464 = vmatpush1.bf16.msra.mxu0 0
    %465 = vmatprep.subr.bf16.mxu0 0
    %466 = vmatpush1.bf16.msra.mxu0 0
    %467 = vmatprep.mubr.bf16.mxu0 0
    %468 = vmatmul.mubr.bf16.gmra.mrb[0].mxu0 %v433
    %v469 = vpop.f32.mrb[0].mxu0
    %v470 = vadd.f32 0.0, %v469
    %v471 = vpop.f32.mrb[0].mxu0
    %v472 = vpop.f32.mrb[0].mxu0
    %v473 = vpop.f32.mrb[0].mxu0
    %474 = vdwg.mxu0
    %v475 = vadd.f32 %v427, %v470
    %v476 = vxor.u32 %v475, 2147483648
    %v477 = vmul.f32 %v476, 1.442695
    %v478 = vpow.pop %v477
    %v479 = vadd.f32 %v478, 1.0
    %v480 = vrcp.pop %v479
    %v481 = vmul.f32 1.0, %v480
    %v482 = vtanh.pop %v475
    %v483 = vmul.f32 %v481, %v413
    %485 = vrot.lane.b32.xlu0 %v482, 64
    %v486 = vpop.permute.xlu0 %485
    %v488 = vmul.f32 %v481, %v486
    %490 = vrot.lane.b32.xlu0 %v488, 32
    %v491 = vpop.permute.xlu0 %490
    %v493 = vadd.f32 %v483, %v491
    %v494 = vtanh.pop %v493
    %496 = vrot.lane.b32.xlu0 %v494, 64
    %v497 = vpop.permute.xlu0 %496
    %v499 = vmul.f32 %v481, %v497
    %501 = vrot.lane.b32.xlu0 %v499, 32
    %v502 = vpop.permute.xlu0 %501
    %s504 = scalar_lea.vmem [#allocation3], 16
    %505 = vst.msk [vmem:[%s504] sm:$0xff] %vm268, %v502
    %s506 = scalar_lea.vmem [#allocation2], 24
    %v507 = vld [vmem:[%s506] sm:$0xff]
    %v508 = vpack.c.bf16 %v499, %v499
    %510 = vrot.lane.b32.xlu0 %v508, 32
    %v511 = vpop.permute.xlu0 %510
    %v513 = vsel %vm268, %v511, 0
    %515 = vmatprep.subr.bf16.mxu0 0
    %516 = vmatpush1.bf16.msra.mxu0 %v264
    %517 = vmatprep.subr.bf16.mxu0 0
    %518 = vmatpush1.bf16.msra.mxu0 %v265
    %519 = vmatprep.subr.bf16.mxu0 0
    %520 = vmatpush1.bf16.msra.mxu0 0
    %521 = vmatprep.subr.bf16.mxu0 0
    %522 = vmatpush1.bf16.msra.mxu0 0
    %523 = vmatprep.subr.bf16.mxu0 0
    %524 = vmatpush1.bf16.msra.mxu0 0
    %525 = vmatprep.subr.bf16.mxu0 0
    %526 = vmatpush1.bf16.msra.mxu0 0
    %527 = vmatprep.subr.bf16.mxu0 0
    %528 = vmatpush1.bf16.msra.mxu0 0
    %529 = vmatprep.subr.bf16.mxu0 0
    %530 = vmatpush1.bf16.msra.mxu0 0
    %531 = vmatprep.subr.bf16.mxu0 0
    %532 = vmatpush1.bf16.msra.mxu0 0
    %533 = vmatprep.subr.bf16.mxu0 0
    %534 = vmatpush1.bf16.msra.mxu0 0
    %535 = vmatprep.subr.bf16.mxu0 0
    %536 = vmatpush1.bf16.msra.mxu0 0
    %537 = vmatprep.subr.bf16.mxu0 0
    %538 = vmatpush1.bf16.msra.mxu0 0
    %539 = vmatprep.subr.bf16.mxu0 0
    %540 = vmatpush1.bf16.msra.mxu0 0
    %541 = vmatprep.subr.bf16.mxu0 0
    %542 = vmatpush1.bf16.msra.mxu0 0
    %543 = vmatprep.subr.bf16.mxu0 0
    %544 = vmatpush1.bf16.msra.mxu0 0
    %545 = vmatprep.subr.bf16.mxu0 0
    %546 = vmatpush1.bf16.msra.mxu0 0
    %547 = vmatprep.mubr.bf16.mxu0 0
    %548 = vmatmul.mubr.bf16.gmra.mrb[0].mxu0 %v513
    %v549 = vpop.f32.mrb[0].mxu0
    %v550 = vadd.f32 0.0, %v549
    %v551 = vpop.f32.mrb[0].mxu0
    %v552 = vpop.f32.mrb[0].mxu0
    %v553 = vpop.f32.mrb[0].mxu0
    %554 = vdwg.mxu0
    %v555 = vadd.f32 %v507, %v550
    %v556 = vxor.u32 %v555, 2147483648
    %v557 = vmul.f32 %v556, 1.442695
    %v558 = vpow.pop %v557
    %v559 = vadd.f32 %v558, 1.0
    %v560 = vrcp.pop %v559
    %v561 = vmul.f32 1.0, %v560
    %v562 = vtanh.pop %v555
    %v563 = vmul.f32 %v561, %v493
    %565 = vrot.lane.b32.xlu0 %v562, 64
    %v566 = vpop.permute.xlu0 %565
    %v568 = vmul.f32 %v561, %v566
    %570 = vrot.lane.b32.xlu0 %v568, 32
    %v571 = vpop.permute.xlu0 %570
    %v573 = vadd.f32 %v563, %v571
    %v574 = vtanh.pop %v573
    %576 = vrot.lane.b32.xlu0 %v574, 64
    %v577 = vpop.permute.xlu0 %576
    %v579 = vmul.f32 %v561, %v577
    %581 = vrot.lane.b32.xlu0 %v579, 32
    %v582 = vpop.permute.xlu0 %581
    %s584 = scalar_lea.vmem [#allocation3], 24
    %585 = vst.msk [vmem:[%s584] sm:$0xff] %vm268, %v582
    %s586 = scalar_lea.vmem [#allocation2], 32
    %v587 = vld [vmem:[%s586] sm:$0xff]
    %v588 = vpack.c.bf16 %v579, %v579
    %590 = vrot.lane.b32.xlu0 %v588, 32
    %v591 = vpop.permute.xlu0 %590
    %v593 = vsel %vm268, %v591, 0
    %595 = vmatprep.subr.bf16.mxu0 0
    %596 = vmatpush1.bf16.msra.mxu0 %v264
    %597 = vmatprep.subr.bf16.mxu0 0
    %598 = vmatpush1.bf16.msra.mxu0 %v265
    %599 = vmatprep.subr.bf16.mxu0 0
    %600 = vmatpush1.bf16.msra.mxu0 0
    %601 = vmatprep.subr.bf16.mxu0 0
    %602 = vmatpush1.bf16.msra.mxu0 0
    %603 = vmatprep.subr.bf16.mxu0 0
    %604 = vmatpush1.bf16.msra.mxu0 0
    %605 = vmatprep.subr.bf16.mxu0 0
    %606 = vmatpush1.bf16.msra.mxu0 0
    %607 = vmatprep.subr.bf16.mxu0 0
    %608 = vmatpush1.bf16.msra.mxu0 0
    %609 = vmatprep.subr.bf16.mxu0 0
    %610 = vmatpush1.bf16.msra.mxu0 0
    %611 = vmatprep.subr.bf16.mxu0 0
    %612 = vmatpush1.bf16.msra.mxu0 0
    %613 = vmatprep.subr.bf16.mxu0 0
    %614 = vmatpush1.bf16.msra.mxu0 0
    %615 = vmatprep.subr.bf16.mxu0 0
    %616 = vmatpush1.bf16.msra.mxu0 0
    %617 = vmatprep.subr.bf16.mxu0 0
    %618 = vmatpush1.bf16.msra.mxu0 0
    %619 = vmatprep.subr.bf16.mxu0 0
    %620 = vmatpush1.bf16.msra.mxu0 0
    %621 = vmatprep.subr.bf16.mxu0 0
    %622 = vmatpush1.bf16.msra.mxu0 0
    %623 = vmatprep.subr.bf16.mxu0 0
    %624 = vmatpush1.bf16.msra.mxu0 0
    %625 = vmatprep.subr.bf16.mxu0 0
    %626 = vmatpush1.bf16.msra.mxu0 0
    %627 = vmatprep.mubr.bf16.mxu0 0
    %628 = vmatmul.mubr.bf16.gmra.mrb[0].mxu0 %v593
    %v629 = vpop.f32.mrb[0].mxu0
    %v630 = vadd.f32 0.0, %v629
    %v631 = vpop.f32.mrb[0].mxu0
    %v632 = vpop.f32.mrb[0].mxu0
    %v633 = vpop.f32.mrb[0].mxu0
    %634 = vdwg.mxu0
    %v635 = vadd.f32 %v587, %v630
    %v636 = vxor.u32 %v635, 2147483648
    %v637 = vmul.f32 %v636, 1.442695
    %v638 = vpow.pop %v637
    %v639 = vadd.f32 %v638, 1.0
    %v640 = vrcp.pop %v639
    %v641 = vmul.f32 1.0, %v640
    %v642 = vtanh.pop %v635
    %v643 = vmul.f32 %v641, %v573
    %645 = vrot.lane.b32.xlu0 %v642, 64
    %v646 = vpop.permute.xlu0 %645
    %v648 = vmul.f32 %v641, %v646
    %650 = vrot.lane.b32.xlu0 %v648, 32
    %v651 = vpop.permute.xlu0 %650
    %v653 = vadd.f32 %v643, %v651
    %v654 = vtanh.pop %v653
    %656 = vrot.lane.b32.xlu0 %v654, 64
    %v657 = vpop.permute.xlu0 %656
    %v659 = vmul.f32 %v641, %v657
    %661 = vrot.lane.b32.xlu0 %v659, 32
    %v662 = vpop.permute.xlu0 %661
    %s664 = scalar_lea.vmem [#allocation3], 32
    %665 = vst.msk [vmem:[%s664] sm:$0xff] %vm268, %v662
    %s666 = scalar_lea.vmem [#allocation2], 40
    %v667 = vld [vmem:[%s666] sm:$0xff]
    %v668 = vpack.c.bf16 %v659, %v659
    %670 = vrot.lane.b32.xlu0 %v668, 32
    %v671 = vpop.permute.xlu0 %670
    %v673 = vsel %vm268, %v671, 0
    %675 = vmatprep.subr.bf16.mxu0 0
    %676 = vmatpush1.bf16.msra.mxu0 %v264
    %677 = vmatprep.subr.bf16.mxu0 0
    %678 = vmatpush1.bf16.msra.mxu0 %v265
    %679 = vmatprep.subr.bf16.mxu0 0
    %680 = vmatpush1.bf16.msra.mxu0 0
    %681 = vmatprep.subr.bf16.mxu0 0
    %682 = vmatpush1.bf16.msra.mxu0 0
    %683 = vmatprep.subr.bf16.mxu0 0
    %684 = vmatpush1.bf16.msra.mxu0 0
    %685 = vmatprep.subr.bf16.mxu0 0
    %686 = vmatpush1.bf16.msra.mxu0 0
    %687 = vmatprep.subr.bf16.mxu0 0
    %688 = vmatpush1.bf16.msra.mxu0 0
    %689 = vmatprep.subr.bf16.mxu0 0
    %690 = vmatpush1.bf16.msra.mxu0 0
    %691 = vmatprep.subr.bf16.mxu0 0
    %692 = vmatpush1.bf16.msra.mxu0 0
    %693 = vmatprep.subr.bf16.mxu0 0
    %694 = vmatpush1.bf16.msra.mxu0 0
    %695 = vmatprep.subr.bf16.mxu0 0
    %696 = vmatpush1.bf16.msra.mxu0 0
    %697 = vmatprep.subr.bf16.mxu0 0
    %698 = vmatpush1.bf16.msra.mxu0 0
    %699 = vmatprep.subr.bf16.mxu0 0
    %700 = vmatpush1.bf16.msra.mxu0 0
    %701 = vmatprep.subr.bf16.mxu0 0
    %702 = vmatpush1.bf16.msra.mxu0 0
    %703 = vmatprep.subr.bf16.mxu0 0
    %704 = vmatpush1.bf16.msra.mxu0 0
    %705 = vmatprep.subr.bf16.mxu0 0
    %706 = vmatpush1.bf16.msra.mxu0 0
    %707 = vmatprep.mubr.bf16.mxu0 0
    %708 = vmatmul.mubr.bf16.gmra.mrb[0].mxu0 %v673
    %v709 = vpop.f32.mrb[0].mxu0
    %v710 = vadd.f32 0.0, %v709
    %v711 = vpop.f32.mrb[0].mxu0
    %v712 = vpop.f32.mrb[0].mxu0
    %v713 = vpop.f32.mrb[0].mxu0
    %714 = vdwg.mxu0
    %v715 = vadd.f32 %v667, %v710
    %v716 = vxor.u32 %v715, 2147483648
    %v717 = vmul.f32 %v716, 1.442695
    %v718 = vpow.pop %v717
    %v719 = vadd.f32 %v718, 1.0
    %v720 = vrcp.pop %v719
    %v721 = vmul.f32 1.0, %v720
    %v722 = vtanh.pop %v715
    %v723 = vmul.f32 %v721, %v653
    %725 = vrot.lane.b32.xlu0 %v722, 64
    %v726 = vpop.permute.xlu0 %725
    %v728 = vmul.f32 %v721, %v726
    %730 = vrot.lane.b32.xlu0 %v728, 32
    %v731 = vpop.permute.xlu0 %730
    %v733 = vadd.f32 %v723, %v731
    %v734 = vtanh.pop %v733
    %736 = vrot.lane.b32.xlu0 %v734, 64
    %v737 = vpop.permute.xlu0 %736
    %v739 = vmul.f32 %v721, %v737
    %741 = vrot.lane.b32.xlu0 %v739, 32
    %v742 = vpop.permute.xlu0 %741
    %s744 = scalar_lea.vmem [#allocation3], 40
    %745 = vst.msk [vmem:[%s744] sm:$0xff] %vm268, %v742
    %s746 = scalar_lea.vmem [#allocation2], 48
    %v747 = vld [vmem:[%s746] sm:$0xff]
    %v748 = vpack.c.bf16 %v739, %v739
    %750 = vrot.lane.b32.xlu0 %v748, 32
    %v751 = vpop.permute.xlu0 %750
    %v753 = vsel %vm268, %v751, 0
    %755 = vmatprep.subr.bf16.mxu0 0
    %756 = vmatpush1.bf16.msra.mxu0 %v264
    %757 = vmatprep.subr.bf16.mxu0 0
    %758 = vmatpush1.bf16.msra.mxu0 %v265
    %759 = vmatprep.subr.bf16.mxu0 0
    %760 = vmatpush1.bf16.msra.mxu0 0
    %761 = vmatprep.subr.bf16.mxu0 0
    %762 = vmatpush1.bf16.msra.mxu0 0
    %763 = vmatprep.subr.bf16.mxu0 0
    %764 = vmatpush1.bf16.msra.mxu0 0
    %765 = vmatprep.subr.bf16.mxu0 0
    %766 = vmatpush1.bf16.msra.mxu0 0
    %767 = vmatprep.subr.bf16.mxu0 0
    %768 = vmatpush1.bf16.msra.mxu0 0
    %769 = vmatprep.subr.bf16.mxu0 0
    %770 = vmatpush1.bf16.msra.mxu0 0
    %771 = vmatprep.subr.bf16.mxu0 0
    %772 = vmatpush1.bf16.msra.mxu0 0
    %773 = vmatprep.subr.bf16.mxu0 0
    %774 = vmatpush1.bf16.msra.mxu0 0
    %775 = vmatprep.subr.bf16.mxu0 0
    %776 = vmatpush1.bf16.msra.mxu0 0
    %777 = vmatprep.subr.bf16.mxu0 0
    %778 = vmatpush1.bf16.msra.mxu0 0
    %779 = vmatprep.subr.bf16.mxu0 0
    %780 = vmatpush1.bf16.msra.mxu0 0
    %781 = vmatprep.subr.bf16.mxu0 0
    %782 = vmatpush1.bf16.msra.mxu0 0
    %783 = vmatprep.subr.bf16.mxu0 0
    %784 = vmatpush1.bf16.msra.mxu0 0
    %785 = vmatprep.subr.bf16.mxu0 0
    %786 = vmatpush1.bf16.msra.mxu0 0
    %787 = vmatprep.mubr.bf16.mxu0 0
    %788 = vmatmul.mubr.bf16.gmra.mrb[0].mxu0 %v753
    %v789 = vpop.f32.mrb[0].mxu0
    %v790 = vadd.f32 0.0, %v789
    %v791 = vpop.f32.mrb[0].mxu0
    %v792 = vpop.f32.mrb[0].mxu0
    %v793 = vpop.f32.mrb[0].mxu0
    %794 = vdwg.mxu0
    %v795 = vadd.f32 %v747, %v790
    %v796 = vxor.u32 %v795, 2147483648
    %v797 = vmul.f32 %v796, 1.442695
    %v798 = vpow.pop %v797
    %v799 = vadd.f32 %v798, 1.0
    %v800 = vrcp.pop %v799
    %v801 = vmul.f32 1.0, %v800
    %v802 = vtanh.pop %v795
    %v803 = vmul.f32 %v801, %v733
    %805 = vrot.lane.b32.xlu0 %v802, 64
    %v806 = vpop.permute.xlu0 %805
    %v808 = vmul.f32 %v801, %v806
    %810 = vrot.lane.b32.xlu0 %v808, 32
    %v811 = vpop.permute.xlu0 %810
    %v813 = vadd.f32 %v803, %v811
    %v814 = vtanh.pop %v813
    %816 = vrot.lane.b32.xlu0 %v814, 64
    %v817 = vpop.permute.xlu0 %816
    %v819 = vmul.f32 %v801, %v817
    %821 = vrot.lane.b32.xlu0 %v819, 32
    %v822 = vpop.permute.xlu0 %821
    %s824 = scalar_lea.vmem [#allocation3], 48
    %825 = vst.msk [vmem:[%s824] sm:$0xff] %vm268, %v822
    %s826 = scalar_lea.vmem [#allocation2], 56
    %v827 = vld [vmem:[%s826] sm:$0xff]
    %v828 = vpack.c.bf16 %v819, %v819
    %830 = vrot.lane.b32.xlu0 %v828, 32
    %v831 = vpop.permute.xlu0 %830
    %v833 = vsel %vm268, %v831, 0
    %835 = vmatprep.subr.bf16.mxu0 0
    %836 = vmatpush1.bf16.msra.mxu0 %v264
    %837 = vmatprep.subr.bf16.mxu0 0
    %838 = vmatpush1.bf16.msra.mxu0 %v265
    %839 = vmatprep.subr.bf16.mxu0 0
    %840 = vmatpush1.bf16.msra.mxu0 0
    %841 = vmatprep.subr.bf16.mxu0 0
    %842 = vmatpush1.bf16.msra.mxu0 0
    %843 = vmatprep.subr.bf16.mxu0 0
    %844 = vmatpush1.bf16.msra.mxu0 0
    %845 = vmatprep.subr.bf16.mxu0 0
    %846 = vmatpush1.bf16.msra.mxu0 0
    %847 = vmatprep.subr.bf16.mxu0 0
    %848 = vmatpush1.bf16.msra.mxu0 0
    %849 = vmatprep.subr.bf16.mxu0 0
    %850 = vmatpush1.bf16.msra.mxu0 0
    %851 = vmatprep.subr.bf16.mxu0 0
    %852 = vmatpush1.bf16.msra.mxu0 0
    %853 = vmatprep.subr.bf16.mxu0 0
    %854 = vmatpush1.bf16.msra.mxu0 0
    %855 = vmatprep.subr.bf16.mxu0 0
    %856 = vmatpush1.bf16.msra.mxu0 0
    %857 = vmatprep.subr.bf16.mxu0 0
    %858 = vmatpush1.bf16.msra.mxu0 0
    %859 = vmatprep.subr.bf16.mxu0 0
    %860 = vmatpush1.bf16.msra.mxu0 0
    %861 = vmatprep.subr.bf16.mxu0 0
    %862 = vmatpush1.bf16.msra.mxu0 0
    %863 = vmatprep.subr.bf16.mxu0 0
    %864 = vmatpush1.bf16.msra.mxu0 0
    %865 = vmatprep.subr.bf16.mxu0 0
    %866 = vmatpush1.bf16.msra.mxu0 0
    %867 = vmatprep.mubr.bf16.mxu0 0
    %868 = vmatmul.mubr.bf16.gmra.mrb[0].mxu0 %v833
    %v869 = vpop.f32.mrb[0].mxu0
    %v870 = vadd.f32 0.0, %v869
    %v871 = vpop.f32.mrb[0].mxu0
    %v872 = vpop.f32.mrb[0].mxu0
    %v873 = vpop.f32.mrb[0].mxu0
    %874 = vdwg.mxu0
    %v875 = vadd.f32 %v827, %v870
    %v876 = vxor.u32 %v875, 2147483648
    %v877 = vmul.f32 %v876, 1.442695
    %v878 = vpow.pop %v877
    %v879 = vadd.f32 %v878, 1.0
    %v880 = vrcp.pop %v879
    %v881 = vmul.f32 1.0, %v880
    %v882 = vtanh.pop %v875
    %v883 = vmul.f32 %v881, %v813
    %885 = vrot.lane.b32.xlu0 %v882, 64
    %v886 = vpop.permute.xlu0 %885
    %v888 = vmul.f32 %v881, %v886
    %890 = vrot.lane.b32.xlu0 %v888, 32
    %v891 = vpop.permute.xlu0 %890
    %v893 = vadd.f32 %v883, %v891
    %v894 = vtanh.pop %v893
    %896 = vrot.lane.b32.xlu0 %v894, 64
    %v897 = vpop.permute.xlu0 %896
    %v899 = vmul.f32 %v881, %v897
    %901 = vrot.lane.b32.xlu0 %v899, 32
    %v902 = vpop.permute.xlu0 %901
    %s904 = scalar_lea.vmem [#allocation3], 56
    %905 = vst.msk [vmem:[%s904] sm:$0xff] %vm268, %v902
    %906 = vst.msk [vmem:[#allocation4] sm:$0xff] %vm268, %v902
    %908 = vrot.lane.b32.xlu0 %v893, 96
    %v909 = vpop.permute.xlu0 %908
    %911 = vst.msk [vmem:[#allocation5] sm:$0xff] %vm268, %v909
    %v912 = vld [vmem:[#allocation3] sm:$0xff]
    %v913 = vld [vmem:[#allocation3 + $0x8] sm:$0xff]
    %v914 = vld [vmem:[#allocation3 + $0x10] sm:$0xff]
    %v915 = vld [vmem:[#allocation3 + $0x18] sm:$0xff]
    %v916 = vld [vmem:[#allocation3 + $0x20] sm:$0xff]
    %v917 = vld [vmem:[#allocation3 + $0x28] sm:$0xff]
    %v918 = vld [vmem:[#allocation3 + $0x30] sm:$0xff]
    %v919 = vld [vmem:[#allocation3 + $0x38] sm:$0xff]
    %v920 = vpack.c.bf16 %v913, %v912
    %v921 = vpack.c.bf16 %v915, %v914
    %v922 = vpack.c.bf16 %v917, %v916
    %v923 = vpack.c.bf16 %v919, %v918
    %v924 = vld [vmem:[#allocation11] sm:$0xf]
    %v925 = vld [vmem:[#allocation11 + $0x4] sm:$0xf]
    %v926 = vld [vmem:[#allocation11 + $0x8] sm:$0xf]
    %v927 = vld [vmem:[#allocation11 + $0xc] sm:$0xf]
    %s928 = scalar_lea.vmem %s4, 1
    %v929 = vld [vmem:[%s928] sm:$0x1]
    %v931 = vlaneseq
    %v932 = vshrl.u32 %v931, 7
    %v933 = vsub.s32 0, %v932
    %v934 = vrot.slane %v929, %v933
    %v940 = vunpack.c.l.b16 %v924
    %v941 = vunpack.c.l.b16 %v925
    %v942 = vunpack.c.l.b16 %v926
    %v943 = vunpack.c.l.b16 %v927
    %v944 = vpack.c.b16 %v941, %v940
    %v945 = vpack.c.b16 %v943, %v942
    %v949 = vsel %vm268, %v920, 0
    %v952 = vsel %vm268, %v921, 0
    %v955 = vsel %vm268, %v922, 0
    %v958 = vsel %vm268, %v923, 0
    %960 = vmatprep.subr.bf16.mxu0 0
    %961 = vmatpush1.bf16.msra.mxu0 %v944
    %962 = vmatprep.subr.bf16.mxu0 0
    %963 = vmatpush1.bf16.msra.mxu0 %v945
    %964 = vmatprep.subr.bf16.mxu0 0
    %965 = vmatpush1.bf16.msra.mxu0 0
    %966 = vmatprep.subr.bf16.mxu0 0
    %967 = vmatpush1.bf16.msra.mxu0 0
    %968 = vmatprep.subr.bf16.mxu0 0
    %969 = vmatpush1.bf16.msra.mxu0 0
    %970 = vmatprep.subr.bf16.mxu0 0
    %971 = vmatpush1.bf16.msra.mxu0 0
    %972 = vmatprep.subr.bf16.mxu0 0
    %973 = vmatpush1.bf16.msra.mxu0 0
    %974 = vmatprep.subr.bf16.mxu0 0
    %975 = vmatpush1.bf16.msra.mxu0 0
    %976 = vmatprep.subr.bf16.mxu0 0
    %977 = vmatpush1.bf16.msra.mxu0 0
    %978 = vmatprep.subr.bf16.mxu0 0
    %979 = vmatpush1.bf16.msra.mxu0 0
    %980 = vmatprep.subr.bf16.mxu0 0
    %981 = vmatpush1.bf16.msra.mxu0 0
    %982 = vmatprep.subr.bf16.mxu0 0
    %983 = vmatpush1.bf16.msra.mxu0 0
    %984 = vmatprep.subr.bf16.mxu0 0
    %985 = vmatpush1.bf16.msra.mxu0 0
    %986 = vmatprep.subr.bf16.mxu0 0
    %987 = vmatpush1.bf16.msra.mxu0 0
    %988 = vmatprep.subr.bf16.mxu0 0
    %989 = vmatpush1.bf16.msra.mxu0 0
    %990 = vmatprep.subr.bf16.mxu0 0
    %991 = vmatpush1.bf16.msra.mxu0 0
    %992 = vmatprep.mubr.bf16.mxu0 0
    %993 = vmatmul.mubr.bf16.gmra.mrb[0].mxu0 %v949
    %v994 = vpop.f32.mrb[0].mxu0
    %v995 = vadd.f32 %v934, %v994
    %v996 = vpop.f32.mrb[0].mxu0
    %v997 = vpop.f32.mrb[0].mxu0
    %v998 = vadd.f32 %v934, %v997
    %v999 = vpop.f32.mrb[0].mxu0
    %1000 = vmatprep.mubr.bf16.mxu0 0
    %1001 = vmatmul.mubr.bf16.gmra.mrb[0].mxu0 %v952
    %v1002 = vpop.f32.mrb[0].mxu0
    %v1003 = vadd.f32 %v934, %v1002
    %v1004 = vpop.f32.mrb[0].mxu0
    %v1005 = vpop.f32.mrb[0].mxu0
    %v1006 = vadd.f32 %v934, %v1005
    %v1007 = vpop.f32.mrb[0].mxu0
    %1008 = vmatprep.mubr.bf16.mxu0 0
    %1009 = vmatmul.mubr.bf16.gmra.mrb[0].mxu0 %v955
    %v1010 = vpop.f32.mrb[0].mxu0
    %v1011 = vadd.f32 %v934, %v1010
    %v1012 = vpop.f32.mrb[0].mxu0
    %v1013 = vpop.f32.mrb[0].mxu0
    %v1014 = vadd.f32 %v934, %v1013
    %v1015 = vpop.f32.mrb[0].mxu0
    %1016 = vmatprep.mubr.bf16.mxu0 0
    %1017 = vmatmul.mubr.bf16.gmra.mrb[0].mxu0 %v958
    %v1018 = vpop.f32.mrb[0].mxu0
    %v1019 = vadd.f32 %v934, %v1018
    %v1020 = vpop.f32.mrb[0].mxu0
    %v1021 = vpop.f32.mrb[0].mxu0
    %v1022 = vadd.f32 %v934, %v1021
    %v1023 = vpop.f32.mrb[0].mxu0
    %1024 = vdwg.mxu0
    %1025 = vst [vmem:[#allocation2] sm:$0xff] %v995
    %1026 = vst [vmem:[#allocation2 + $0x8] sm:$0xff] %v998
    %1027 = vst [vmem:[#allocation2 + $0x10] sm:$0xff] %v1003
    %1028 = vst [vmem:[#allocation2 + $0x18] sm:$0xff] %v1006
    %1029 = vst [vmem:[#allocation2 + $0x20] sm:$0xff] %v1011
    %1030 = vst [vmem:[#allocation2 + $0x28] sm:$0xff] %v1014
    %1031 = vst [vmem:[#allocation2 + $0x30] sm:$0xff] %v1019
    %1032 = vst [vmem:[#allocation2 + $0x38] sm:$0xff] %v1022
    %s1033 = scalar_lea.vmem [#allocation12], 16
    %v1034 = vld [vmem:[%s1033] sm:$0xf]
    %v1035 = vld [vmem:[%s1033 + $0x4] sm:$0xf]
    %v1036 = vld [vmem:[%s1033 + $0x8] sm:$0xf]
    %v1037 = vld [vmem:[%s1033 + $0xc] sm:$0xf]
    %s1038 = scalar_lea.vmem [#allocation4], 8
    %v1039 = vld [vmem:[%s1038] sm:$0xff]
    %s1040 = scalar_lea.vmem [#allocation5], 8
    %v1041 = vld [vmem:[%s1040] sm:$0xff]
    %v1042 = vld [vmem:[#allocation2] sm:$0xff]
    %v1043 = vpack.c.bf16 %v1039, %v1039
    %v1048 = vunpack.c.l.b16 %v1034
    %v1049 = vunpack.c.l.b16 %v1035
    %v1050 = vunpack.c.l.b16 %v1036
    %v1051 = vunpack.c.l.b16 %v1037
    %v1052 = vpack.c.b16 %v1049, %v1048
    %v1053 = vpack.c.b16 %v1051, %v1050
    %v1057 = vsel %vm268, %v1043, 0
    %1059 = vmatprep.subr.bf16.mxu0 0
    %1060 = vmatpush1.bf16.msra.mxu0 %v1052
    %1061 = vmatprep.subr.bf16.mxu0 0
    %1062 = vmatpush1.bf16.msra.mxu0 %v1053
    %1063 = vmatprep.subr.bf16.mxu0 0
    %1064 = vmatpush1.bf16.msra.mxu0 0
    %1065 = vmatprep.subr.bf16.mxu0 0
    %1066 = vmatpush1.bf16.msra.mxu0 0
    %1067 = vmatprep.subr.bf16.mxu0 0
    %1068 = vmatpush1.bf16.msra.mxu0 0
    %1069 = vmatprep.subr.bf16.mxu0 0
    %1070 = vmatpush1.bf16.msra.mxu0 0
    %1071 = vmatprep.subr.bf16.mxu0 0
    %1072 = vmatpush1.bf16.msra.mxu0 0
    %1073 = vmatprep.subr.bf16.mxu0 0
    %1074 = vmatpush1.bf16.msra.mxu0 0
    %1075 = vmatprep.subr.bf16.mxu0 0
    %1076 = vmatpush1.bf16.msra.mxu0 0
    %1077 = vmatprep.subr.bf16.mxu0 0
    %1078 = vmatpush1.bf16.msra.mxu0 0
    %1079 = vmatprep.subr.bf16.mxu0 0
    %1080 = vmatpush1.bf16.msra.mxu0 0
    %1081 = vmatprep.subr.bf16.mxu0 0
    %1082 = vmatpush1.bf16.msra.mxu0 0
    %1083 = vmatprep.subr.bf16.mxu0 0
    %1084 = vmatpush1.bf16.msra.mxu0 0
    %1085 = vmatprep.subr.bf16.mxu0 0
    %1086 = vmatpush1.bf16.msra.mxu0 0
    %1087 = vmatprep.subr.bf16.mxu0 0
    %1088 = vmatpush1.bf16.msra.mxu0 0
    %1089 = vmatprep.subr.bf16.mxu0 0
    %1090 = vmatpush1.bf16.msra.mxu0 0
    %1091 = vmatprep.mubr.bf16.mxu0 0
    %1092 = vmatmul.mubr.bf16.gmra.mrb[0].mxu0 %v1057
    %v1093 = vpop.f32.mrb[0].mxu0
    %v1094 = vadd.f32 0.0, %v1093
    %v1095 = vpop.f32.mrb[0].mxu0
    %v1096 = vpop.f32.mrb[0].mxu0
    %v1097 = vpop.f32.mrb[0].mxu0
    %1098 = vdwg.mxu0
    %v1099 = vadd.f32 %v1042, %v1094
    %v1100 = vxor.u32 %v1099, 2147483648
    %v1101 = vmul.f32 %v1100, 1.442695
    %v1102 = vpow.pop %v1101
    %v1103 = vadd.f32 %v1102, 1.0
    %v1104 = vrcp.pop %v1103
    %v1105 = vmul.f32 1.0, %v1104
    %v1106 = vtanh.pop %v1099
    %1108 = vrot.lane.b32.xlu0 %v1041, 32
    %v1109 = vpop.permute.xlu0 %1108
    %v1111 = vmul.f32 %v1105, %v1109
    %1113 = vrot.lane.b32.xlu0 %v1106, 64
    %v1114 = vpop.permute.xlu0 %1113
    %v1116 = vmul.f32 %v1105, %v1114
    %1118 = vrot.lane.b32.xlu0 %v1116, 32
    %v1119 = vpop.permute.xlu0 %1118
    %v1121 = vadd.f32 %v1111, %v1119
    %v1122 = vtanh.pop %v1121
    %1124 = vrot.lane.b32.xlu0 %v1122, 64
    %v1125 = vpop.permute.xlu0 %1124
    %v1127 = vmul.f32 %v1105, %v1125
    %v1128 = vld [vmem:[%s346] sm:$0xff]
    %v1129 = vpack.c.bf16 %v1127, %v1127
    %1131 = vrot.lane.b32.xlu0 %v1129, 32
    %v1132 = vpop.permute.xlu0 %1131
    %v1134 = vsel %vm268, %v1132, 0
    %1136 = vmatprep.subr.bf16.mxu0 0
    %1137 = vmatpush1.bf16.msra.mxu0 %v1052
    %1138 = vmatprep.subr.bf16.mxu0 0
    %1139 = vmatpush1.bf16.msra.mxu0 %v1053
    %1140 = vmatprep.subr.bf16.mxu0 0
    %1141 = vmatpush1.bf16.msra.mxu0 0
    %1142 = vmatprep.subr.bf16.mxu0 0
    %1143 = vmatpush1.bf16.msra.mxu0 0
    %1144 = vmatprep.subr.bf16.mxu0 0
    %1145 = vmatpush1.bf16.msra.mxu0 0
    %1146 = vmatprep.subr.bf16.mxu0 0
    %1147 = vmatpush1.bf16.msra.mxu0 0
    %1148 = vmatprep.subr.bf16.mxu0 0
    %1149 = vmatpush1.bf16.msra.mxu0 0
    %1150 = vmatprep.subr.bf16.mxu0 0
    %1151 = vmatpush1.bf16.msra.mxu0 0
    %1152 = vmatprep.subr.bf16.mxu0 0
    %1153 = vmatpush1.bf16.msra.mxu0 0
    %1154 = vmatprep.subr.bf16.mxu0 0
    %1155 = vmatpush1.bf16.msra.mxu0 0
    %1156 = vmatprep.subr.bf16.mxu0 0
    %1157 = vmatpush1.bf16.msra.mxu0 0
    %1158 = vmatprep.subr.bf16.mxu0 0
    %1159 = vmatpush1.bf16.msra.mxu0 0
    %1160 = vmatprep.subr.bf16.mxu0 0
    %1161 = vmatpush1.bf16.msra.mxu0 0
    %1162 = vmatprep.subr.bf16.mxu0 0
    %1163 = vmatpush1.bf16.msra.mxu0 0
    %1164 = vmatprep.subr.bf16.mxu0 0
    %1165 = vmatpush1.bf16.msra.mxu0 0
    %1166 = vmatprep.subr.bf16.mxu0 0
    %1167 = vmatpush1.bf16.msra.mxu0 0
    %1168 = vmatprep.mubr.bf16.mxu0 0
    %1169 = vmatmul.mubr.bf16.gmra.mrb[0].mxu0 %v1134
    %v1170 = vpop.f32.mrb[0].mxu0
    %v1171 = vadd.f32 0.0, %v1170
    %v1172 = vpop.f32.mrb[0].mxu0
    %v1173 = vpop.f32.mrb[0].mxu0
    %v1174 = vpop.f32.mrb[0].mxu0
    %1175 = vdwg.mxu0
    %v1176 = vadd.f32 %v1128, %v1171
    %v1177 = vxor.u32 %v1176, 2147483648
    %v1178 = vmul.f32 %v1177, 1.442695
    %v1179 = vpow.pop %v1178
    %v1180 = vadd.f32 %v1179, 1.0
    %v1181 = vrcp.pop %v1180
    %v1182 = vmul.f32 1.0, %v1181
    %v1183 = vtanh.pop %v1176
    %v1184 = vmul.f32 %v1182, %v1121
    %1186 = vrot.lane.b32.xlu0 %v1183, 64
    %v1187 = vpop.permute.xlu0 %1186
    %v1189 = vmul.f32 %v1182, %v1187
    %1191 = vrot.lane.b32.xlu0 %v1189, 32
    %v1192 = vpop.permute.xlu0 %1191
    %v1194 = vadd.f32 %v1184, %v1192
    %v1195 = vtanh.pop %v1194
    %1197 = vrot.lane.b32.xlu0 %v1195, 64
    %v1198 = vpop.permute.xlu0 %1197
    %v1200 = vmul.f32 %v1182, %v1198
    %v1201 = vld [vmem:[%s426] sm:$0xff]
    %v1202 = vpack.c.bf16 %v1200, %v1200
    %1204 = vrot.lane.b32.xlu0 %v1202, 32
    %v1205 = vpop.permute.xlu0 %1204
    %v1207 = vsel %vm268, %v1205, 0
    %1209 = vmatprep.subr.bf16.mxu0 0
    %1210 = vmatpush1.bf16.msra.mxu0 %v1052
    %1211 = vmatprep.subr.bf16.mxu0 0
    %1212 = vmatpush1.bf16.msra.mxu0 %v1053
    %1213 = vmatprep.subr.bf16.mxu0 0
    %1214 = vmatpush1.bf16.msra.mxu0 0
    %1215 = vmatprep.subr.bf16.mxu0 0
    %1216 = vmatpush1.bf16.msra.mxu0 0
    %1217 = vmatprep.subr.bf16.mxu0 0
    %1218 = vmatpush1.bf16.msra.mxu0 0
    %1219 = vmatprep.subr.bf16.mxu0 0
    %1220 = vmatpush1.bf16.msra.mxu0 0
    %1221 = vmatprep.subr.bf16.mxu0 0
    %1222 = vmatpush1.bf16.msra.mxu0 0
    %1223 = vmatprep.subr.bf16.mxu0 0
    %1224 = vmatpush1.bf16.msra.mxu0 0
    %1225 = vmatprep.subr.bf16.mxu0 0
    %1226 = vmatpush1.bf16.msra.mxu0 0
    %1227 = vmatprep.subr.bf16.mxu0 0
    %1228 = vmatpush1.bf16.msra.mxu0 0
    %1229 = vmatprep.subr.bf16.mxu0 0
    %1230 = vmatpush1.bf16.msra.mxu0 0
    %1231 = vmatprep.subr.bf16.mxu0 0
    %1232 = vmatpush1.bf16.msra.mxu0 0
    %1233 = vmatprep.subr.bf16.mxu0 0
    %1234 = vmatpush1.bf16.msra.mxu0 0
    %1235 = vmatprep.subr.bf16.mxu0 0
    %1236 = vmatpush1.bf16.msra.mxu0 0
    %1237 = vmatprep.subr.bf16.mxu0 0
    %1238 = vmatpush1.bf16.msra.mxu0 0
    %1239 = vmatprep.subr.bf16.mxu0 0
    %1240 = vmatpush1.bf16.msra.mxu0 0
    %1241 = vmatprep.mubr.bf16.mxu0 0
    %1242 = vmatmul.mubr.bf16.gmra.mrb[0].mxu0 %v1207
    %v1243 = vpop.f32.mrb[0].mxu0
    %v1244 = vadd.f32 0.0, %v1243
    %v1245 = vpop.f32.mrb[0].mxu0
    %v1246 = vpop.f32.mrb[0].mxu0
    %v1247 = vpop.f32.mrb[0].mxu0
    %1248 = vdwg.mxu0
    %v1249 = vadd.f32 %v1201, %v1244
    %v1250 = vxor.u32 %v1249, 2147483648
    %v1251 = vmul.f32 %v1250, 1.442695
    %v1252 = vpow.pop %v1251
    %v1253 = vadd.f32 %v1252, 1.0
    %v1254 = vrcp.pop %v1253
    %v1255 = vmul.f32 1.0, %v1254
    %v1256 = vtanh.pop %v1249
    %v1257 = vmul.f32 %v1255, %v1194
    %1259 = vrot.lane.b32.xlu0 %v1256, 64
    %v1260 = vpop.permute.xlu0 %1259
    %v1262 = vmul.f32 %v1255, %v1260
    %1264 = vrot.lane.b32.xlu0 %v1262, 32
    %v1265 = vpop.permute.xlu0 %1264
    %v1267 = vadd.f32 %v1257, %v1265
    %v1268 = vtanh.pop %v1267
    %1270 = vrot.lane.b32.xlu0 %v1268, 64
    %v1271 = vpop.permute.xlu0 %1270
    %v1273 = vmul.f32 %v1255, %v1271
    %v1274 = vld [vmem:[%s506] sm:$0xff]
    %v1275 = vpack.c.bf16 %v1273, %v1273
    %1277 = vrot.lane.b32.xlu0 %v1275, 32
    %v1278 = vpop.permute.xlu0 %1277
    %v1280 = vsel %vm268, %v1278, 0
    %1282 = vmatprep.subr.bf16.mxu0 0
    %1283 = vmatpush1.bf16.msra.mxu0 %v1052
    %1284 = vmatprep.subr.bf16.mxu0 0
    %1285 = vmatpush1.bf16.msra.mxu0 %v1053
    %1286 = vmatprep.subr.bf16.mxu0 0
    %1287 = vmatpush1.bf16.msra.mxu0 0
    %1288 = vmatprep.subr.bf16.mxu0 0
    %1289 = vmatpush1.bf16.msra.mxu0 0
    %1290 = vmatprep.subr.bf16.mxu0 0
    %1291 = vmatpush1.bf16.msra.mxu0 0
    %1292 = vmatprep.subr.bf16.mxu0 0
    %1293 = vmatpush1.bf16.msra.mxu0 0
    %1294 = vmatprep.subr.bf16.mxu0 0
    %1295 = vmatpush1.bf16.msra.mxu0 0
    %1296 = vmatprep.subr.bf16.mxu0 0
    %1297 = vmatpush1.bf16.msra.mxu0 0
    %1298 = vmatprep.subr.bf16.mxu0 0
    %1299 = vmatpush1.bf16.msra.mxu0 0
    %1300 = vmatprep.subr.bf16.mxu0 0
    %1301 = vmatpush1.bf16.msra.mxu0 0
    %1302 = vmatprep.subr.bf16.mxu0 0
    %1303 = vmatpush1.bf16.msra.mxu0 0
    %1304 = vmatprep.subr.bf16.mxu0 0
    %1305 = vmatpush1.bf16.msra.mxu0 0
    %1306 = vmatprep.subr.bf16.mxu0 0
    %1307 = vmatpush1.bf16.msra.mxu0 0
    %1308 = vmatprep.subr.bf16.mxu0 0
    %1309 = vmatpush1.bf16.msra.mxu0 0
    %1310 = vmatprep.subr.bf16.mxu0 0
    %1311 = vmatpush1.bf16.msra.mxu0 0
    %1312 = vmatprep.subr.bf16.mxu0 0
    %1313 = vmatpush1.bf16.msra.mxu0 0
    %1314 = vmatprep.mubr.bf16.mxu0 0
    %1315 = vmatmul.mubr.bf16.gmra.mrb[0].mxu0 %v1280
    %v1316 = vpop.f32.mrb[0].mxu0
    %v1317 = vadd.f32 0.0, %v1316
    %v1318 = vpop.f32.mrb[0].mxu0
    %v1319 = vpop.f32.mrb[0].mxu0
    %v1320 = vpop.f32.mrb[0].mxu0
    %1321 = vdwg.mxu0
    %v1322 = vadd.f32 %v1274, %v1317
    %v1323 = vxor.u32 %v1322, 2147483648
    %v1324 = vmul.f32 %v1323, 1.442695
    %v1325 = vpow.pop %v1324
    %v1326 = vadd.f32 %v1325, 1.0
    %v1327 = vrcp.pop %v1326
    %v1328 = vmul.f32 1.0, %v1327
    %v1329 = vtanh.pop %v1322
    %v1330 = vmul.f32 %v1328, %v1267
    %1332 = vrot.lane.b32.xlu0 %v1329, 64
    %v1333 = vpop.permute.xlu0 %1332
    %v1335 = vmul.f32 %v1328, %v1333
    %1337 = vrot.lane.b32.xlu0 %v1335, 32
    %v1338 = vpop.permute.xlu0 %1337
    %v1340 = vadd.f32 %v1330, %v1338
    %v1341 = vtanh.pop %v1340
    %1343 = vrot.lane.b32.xlu0 %v1341, 64
    %v1344 = vpop.permute.xlu0 %1343
    %v1346 = vmul.f32 %v1328, %v1344
    %v1347 = vld [vmem:[%s586] sm:$0xff]
    %v1348 = vpack.c.bf16 %v1346, %v1346
    %1350 = vrot.lane.b32.xlu0 %v1348, 32
    %v1351 = vpop.permute.xlu0 %1350
    %v1353 = vsel %vm268, %v1351, 0
    %1355 = vmatprep.subr.bf16.mxu0 0
    %1356 = vmatpush1.bf16.msra.mxu0 %v1052
    %1357 = vmatprep.subr.bf16.mxu0 0
    %1358 = vmatpush1.bf16.msra.mxu0 %v1053
    %1359 = vmatprep.subr.bf16.mxu0 0
    %1360 = vmatpush1.bf16.msra.mxu0 0
    %1361 = vmatprep.subr.bf16.mxu0 0
    %1362 = vmatpush1.bf16.msra.mxu0 0
    %1363 = vmatprep.subr.bf16.mxu0 0
    %1364 = vmatpush1.bf16.msra.mxu0 0
    %1365 = vmatprep.subr.bf16.mxu0 0
    %1366 = vmatpush1.bf16.msra.mxu0 0
    %1367 = vmatprep.subr.bf16.mxu0 0
    %1368 = vmatpush1.bf16.msra.mxu0 0
    %1369 = vmatprep.subr.bf16.mxu0 0
    %1370 = vmatpush1.bf16.msra.mxu0 0
    %1371 = vmatprep.subr.bf16.mxu0 0
    %1372 = vmatpush1.bf16.msra.mxu0 0
    %1373 = vmatprep.subr.bf16.mxu0 0
    %1374 = vmatpush1.bf16.msra.mxu0 0
    %1375 = vmatprep.subr.bf16.mxu0 0
    %1376 = vmatpush1.bf16.msra.mxu0 0
    %1377 = vmatprep.subr.bf16.mxu0 0
    %1378 = vmatpush1.bf16.msra.mxu0 0
    %1379 = vmatprep.subr.bf16.mxu0 0
    %1380 = vmatpush1.bf16.msra.mxu0 0
    %1381 = vmatprep.subr.bf16.mxu0 0
    %1382 = vmatpush1.bf16.msra.mxu0 0
    %1383 = vmatprep.subr.bf16.mxu0 0
    %1384 = vmatpush1.bf16.msra.mxu0 0
    %1385 = vmatprep.subr.bf16.mxu0 0
    %1386 = vmatpush1.bf16.msra.mxu0 0
    %1387 = vmatprep.mubr.bf16.mxu0 0
    %1388 = vmatmul.mubr.bf16.gmra.mrb[0].mxu0 %v1353
    %v1389 = vpop.f32.mrb[0].mxu0
    %v1390 = vadd.f32 0.0, %v1389
    %v1391 = vpop.f32.mrb[0].mxu0
    %v1392 = vpop.f32.mrb[0].mxu0
    %v1393 = vpop.f32.mrb[0].mxu0
    %1394 = vdwg.mxu0
    %v1395 = vadd.f32 %v1347, %v1390
    %v1396 = vxor.u32 %v1395, 2147483648
    %v1397 = vmul.f32 %v1396, 1.442695
    %v1398 = vpow.pop %v1397
    %v1399 = vadd.f32 %v1398, 1.0
    %v1400 = vrcp.pop %v1399
    %v1401 = vmul.f32 1.0, %v1400
    %v1402 = vtanh.pop %v1395
    %v1403 = vmul.f32 %v1401, %v1340
    %1405 = vrot.lane.b32.xlu0 %v1402, 64
    %v1406 = vpop.permute.xlu0 %1405
    %v1408 = vmul.f32 %v1401, %v1406
    %1410 = vrot.lane.b32.xlu0 %v1408, 32
    %v1411 = vpop.permute.xlu0 %1410
    %v1413 = vadd.f32 %v1403, %v1411
    %v1414 = vtanh.pop %v1413
    %1416 = vrot.lane.b32.xlu0 %v1414, 64
    %v1417 = vpop.permute.xlu0 %1416
    %v1419 = vmul.f32 %v1401, %v1417
    %v1420 = vld [vmem:[%s666] sm:$0xff]
    %v1421 = vpack.c.bf16 %v1419, %v1419
    %1423 = vrot.lane.b32.xlu0 %v1421, 32
    %v1424 = vpop.permute.xlu0 %1423
    %v1426 = vsel %vm268, %v1424, 0
    %1428 = vmatprep.subr.bf16.mxu0 0
    %1429 = vmatpush1.bf16.msra.mxu0 %v1052
    %1430 = vmatprep.subr.bf16.mxu0 0
    %1431 = vmatpush1.bf16.msra.mxu0 %v1053
    %1432 = vmatprep.subr.bf16.mxu0 0
    %1433 = vmatpush1.bf16.msra.mxu0 0
    %1434 = vmatprep.subr.bf16.mxu0 0
    %1435 = vmatpush1.bf16.msra.mxu0 0
    %1436 = vmatprep.subr.bf16.mxu0 0
    %1437 = vmatpush1.bf16.msra.mxu0 0
    %1438 = vmatprep.subr.bf16.mxu0 0
    %1439 = vmatpush1.bf16.msra.mxu0 0
    %1440 = vmatprep.subr.bf16.mxu0 0
    %1441 = vmatpush1.bf16.msra.mxu0 0
    %1442 = vmatprep.subr.bf16.mxu0 0
    %1443 = vmatpush1.bf16.msra.mxu0 0
    %1444 = vmatprep.subr.bf16.mxu0 0
    %1445 = vmatpush1.bf16.msra.mxu0 0
    %1446 = vmatprep.subr.bf16.mxu0 0
    %1447 = vmatpush1.bf16.msra.mxu0 0
    %1448 = vmatprep.subr.bf16.mxu0 0
    %1449 = vmatpush1.bf16.msra.mxu0 0
    %1450 = vmatprep.subr.bf16.mxu0 0
    %1451 = vmatpush1.bf16.msra.mxu0 0
    %1452 = vmatprep.subr.bf16.mxu0 0
    %1453 = vmatpush1.bf16.msra.mxu0 0
    %1454 = vmatprep.subr.bf16.mxu0 0
    %1455 = vmatpush1.bf16.msra.mxu0 0
    %1456 = vmatprep.subr.bf16.mxu0 0
    %1457 = vmatpush1.bf16.msra.mxu0 0
    %1458 = vmatprep.subr.bf16.mxu0 0
    %1459 = vmatpush1.bf16.msra.mxu0 0
    %1460 = vmatprep.mubr.bf16.mxu0 0
    %1461 = vmatmul.mubr.bf16.gmra.mrb[0].mxu0 %v1426
    %v1462 = vpop.f32.mrb[0].mxu0
    %v1463 = vadd.f32 0.0, %v1462
    %v1464 = vpop.f32.mrb[0].mxu0
    %v1465 = vpop.f32.mrb[0].mxu0
    %v1466 = vpop.f32.mrb[0].mxu0
    %1467 = vdwg.mxu0
    %v1468 = vadd.f32 %v1420, %v1463
    %v1469 = vxor.u32 %v1468, 2147483648
    %v1470 = vmul.f32 %v1469, 1.442695
    %v1471 = vpow.pop %v1470
    %v1472 = vadd.f32 %v1471, 1.0
    %v1473 = vrcp.pop %v1472
    %v1474 = vmul.f32 1.0, %v1473
    %v1475 = vtanh.pop %v1468
    %v1476 = vmul.f32 %v1474, %v1413
    %1478 = vrot.lane.b32.xlu0 %v1475, 64
    %v1479 = vpop.permute.xlu0 %1478
    %v1481 = vmul.f32 %v1474, %v1479
    %1483 = vrot.lane.b32.xlu0 %v1481, 32
    %v1484 = vpop.permute.xlu0 %1483
    %v1486 = vadd.f32 %v1476, %v1484
    %v1487 = vtanh.pop %v1486
    %1489 = vrot.lane.b32.xlu0 %v1487, 64
    %v1490 = vpop.permute.xlu0 %1489
    %v1492 = vmul.f32 %v1474, %v1490
    %v1493 = vld [vmem:[%s746] sm:$0xff]
    %v1494 = vpack.c.bf16 %v1492, %v1492
    %1496 = vrot.lane.b32.xlu0 %v1494, 32
    %v1497 = vpop.permute.xlu0 %1496
    %v1499 = vsel %vm268, %v1497, 0
    %1501 = vmatprep.subr.bf16.mxu0 0
    %1502 = vmatpush1.bf16.msra.mxu0 %v1052
    %1503 = vmatprep.subr.bf16.mxu0 0
    %1504 = vmatpush1.bf16.msra.mxu0 %v1053
    %1505 = vmatprep.subr.bf16.mxu0 0
    %1506 = vmatpush1.bf16.msra.mxu0 0
    %1507 = vmatprep.subr.bf16.mxu0 0
    %1508 = vmatpush1.bf16.msra.mxu0 0
    %1509 = vmatprep.subr.bf16.mxu0 0
    %1510 = vmatpush1.bf16.msra.mxu0 0
    %1511 = vmatprep.subr.bf16.mxu0 0
    %1512 = vmatpush1.bf16.msra.mxu0 0
    %1513 = vmatprep.subr.bf16.mxu0 0
    %1514 = vmatpush1.bf16.msra.mxu0 0
    %1515 = vmatprep.subr.bf16.mxu0 0
    %1516 = vmatpush1.bf16.msra.mxu0 0
    %1517 = vmatprep.subr.bf16.mxu0 0
    %1518 = vmatpush1.bf16.msra.mxu0 0
    %1519 = vmatprep.subr.bf16.mxu0 0
    %1520 = vmatpush1.bf16.msra.mxu0 0
    %1521 = vmatprep.subr.bf16.mxu0 0
    %1522 = vmatpush1.bf16.msra.mxu0 0
    %1523 = vmatprep.subr.bf16.mxu0 0
    %1524 = vmatpush1.bf16.msra.mxu0 0
    %1525 = vmatprep.subr.bf16.mxu0 0
    %1526 = vmatpush1.bf16.msra.mxu0 0
    %1527 = vmatprep.subr.bf16.mxu0 0
    %1528 = vmatpush1.bf16.msra.mxu0 0
    %1529 = vmatprep.subr.bf16.mxu0 0
    %1530 = vmatpush1.bf16.msra.mxu0 0
    %1531 = vmatprep.subr.bf16.mxu0 0
    %1532 = vmatpush1.bf16.msra.mxu0 0
    %1533 = vmatprep.mubr.bf16.mxu0 0
    %1534 = vmatmul.mubr.bf16.gmra.mrb[0].mxu0 %v1499
    %v1535 = vpop.f32.mrb[0].mxu0
    %v1536 = vadd.f32 0.0, %v1535
    %v1537 = vpop.f32.mrb[0].mxu0
    %v1538 = vpop.f32.mrb[0].mxu0
    %v1539 = vpop.f32.mrb[0].mxu0
    %1540 = vdwg.mxu0
    %v1541 = vadd.f32 %v1493, %v1536
    %v1542 = vxor.u32 %v1541, 2147483648
    %v1543 = vmul.f32 %v1542, 1.442695
    %v1544 = vpow.pop %v1543
    %v1545 = vadd.f32 %v1544, 1.0
    %v1546 = vrcp.pop %v1545
    %v1547 = vmul.f32 1.0, %v1546
    %v1548 = vtanh.pop %v1541
    %v1549 = vmul.f32 %v1547, %v1486
    %1551 = vrot.lane.b32.xlu0 %v1548, 64
    %v1552 = vpop.permute.xlu0 %1551
    %v1554 = vmul.f32 %v1547, %v1552
    %1556 = vrot.lane.b32.xlu0 %v1554, 32
    %v1557 = vpop.permute.xlu0 %1556
    %v1559 = vadd.f32 %v1549, %v1557
    %v1560 = vtanh.pop %v1559
    %1562 = vrot.lane.b32.xlu0 %v1560, 64
    %v1563 = vpop.permute.xlu0 %1562
    %v1565 = vmul.f32 %v1547, %v1563
    %v1566 = vld [vmem:[%s826] sm:$0xff]
    %v1567 = vpack.c.bf16 %v1565, %v1565
    %1569 = vrot.lane.b32.xlu0 %v1567, 32
    %v1570 = vpop.permute.xlu0 %1569
    %v1572 = vsel %vm268, %v1570, 0
    %1574 = vmatprep.subr.bf16.mxu0 0
    %1575 = vmatpush1.bf16.msra.mxu0 %v1052
    %1576 = vmatprep.subr.bf16.mxu0 0
    %1577 = vmatpush1.bf16.msra.mxu0 %v1053
    %1578 = vmatprep.subr.bf16.mxu0 0
    %1579 = vmatpush1.bf16.msra.mxu0 0
    %1580 = vmatprep.subr.bf16.mxu0 0
    %1581 = vmatpush1.bf16.msra.mxu0 0
    %1582 = vmatprep.subr.bf16.mxu0 0
    %1583 = vmatpush1.bf16.msra.mxu0 0
    %1584 = vmatprep.subr.bf16.mxu0 0
    %1585 = vmatpush1.bf16.msra.mxu0 0
    %1586 = vmatprep.subr.bf16.mxu0 0
    %1587 = vmatpush1.bf16.msra.mxu0 0
    %1588 = vmatprep.subr.bf16.mxu0 0
    %1589 = vmatpush1.bf16.msra.mxu0 0
    %1590 = vmatprep.subr.bf16.mxu0 0
    %1591 = vmatpush1.bf16.msra.mxu0 0
    %1592 = vmatprep.subr.bf16.mxu0 0
    %1593 = vmatpush1.bf16.msra.mxu0 0
    %1594 = vmatprep.subr.bf16.mxu0 0
    %1595 = vmatpush1.bf16.msra.mxu0 0
    %1596 = vmatprep.subr.bf16.mxu0 0
    %1597 = vmatpush1.bf16.msra.mxu0 0
    %1598 = vmatprep.subr.bf16.mxu0 0
    %1599 = vmatpush1.bf16.msra.mxu0 0
    %1600 = vmatprep.subr.bf16.mxu0 0
    %1601 = vmatpush1.bf16.msra.mxu0 0
    %1602 = vmatprep.subr.bf16.mxu0 0
    %1603 = vmatpush1.bf16.msra.mxu0 0
    %1604 = vmatprep.subr.bf16.mxu0 0
    %1605 = vmatpush1.bf16.msra.mxu0 0
    %1606 = vmatprep.mubr.bf16.mxu0 0
    %1607 = vmatmul.mubr.bf16.gmra.mrb[0].mxu0 %v1572
    %v1608 = vpop.f32.mrb[0].mxu0
    %v1609 = vadd.f32 0.0, %v1608
    %v1610 = vpop.f32.mrb[0].mxu0
    %v1611 = vpop.f32.mrb[0].mxu0
    %v1612 = vpop.f32.mrb[0].mxu0
    %1613 = vdwg.mxu0
    %v1614 = vadd.f32 %v1566, %v1609
    %v1615 = vxor.u32 %v1614, 2147483648
    %v1616 = vmul.f32 %v1615, 1.442695
    %v1617 = vpow.pop %v1616
    %v1618 = vadd.f32 %v1617, 1.0
    %v1619 = vrcp.pop %v1618
    %v1620 = vmul.f32 1.0, %v1619
    %v1621 = vtanh.pop %v1614
    %v1622 = vmul.f32 %v1620, %v1559
    %1624 = vrot.lane.b32.xlu0 %v1621, 64
    %v1625 = vpop.permute.xlu0 %1624
    %v1627 = vmul.f32 %v1620, %v1625
    %1629 = vrot.lane.b32.xlu0 %v1627, 32
    %v1630 = vpop.permute.xlu0 %1629
    %v1632 = vadd.f32 %v1622, %v1630
    %v1633 = vtanh.pop %v1632
    %1635 = vrot.lane.b32.xlu0 %v1633, 64
    %v1636 = vpop.permute.xlu0 %1635
    %v1638 = vmul.f32 %v1620, %v1636
    %1640 = vrot.lane.b32.xlu0 %v1638, 32
    %v1641 = vpop.permute.xlu0 %1640
    %1643 = vst.msk [vmem:[%s1038] sm:$0xff] %vm268, %v1641
    %1645 = vrot.lane.b32.xlu0 %v1632, 96
    %v1646 = vpop.permute.xlu0 %1645
    %1648 = vst.msk [vmem:[%s1040] sm:$0xff] %vm268, %v1646
    // Predicated region
    $region50: #{tpu_custom_call.1} parent=1 // pred_check
      %p1649 = pneg %p83
    $region51: #{tpu_custom_call.1} parent=1 // pred_check_branch
      %1651 = sbr.rel (%p1649) target = $region53
    $region52: #{tpu_custom_call.1} parent=1 // pred_region
      %v1652 = vpack.c.bf16 %v1638, %v1638
      %v1653 = vld [vmem:[%s5] sm:$0xf]
      %v1654 = vld [vmem:[%s5 + $0x4] sm:$0xf]
      %v1655 = vld [vmem:[%s5 + $0x8] sm:$0xf]
      %v1656 = vld [vmem:[%s5 + $0xc] sm:$0xf]
      %v1657 = vld [vmem:[%s6] sm:$0x1]
      %v1659 = vlaneseq
      %v1660 = vshrl.u32 %v1659, 7
      %v1661 = vsub.s32 0, %v1660
      %v1662 = vrot.slane %v1657, %v1661
      %1665 = vrot.lane.b32.xlu0 %v1652, 32
      %v1666 = vpop.permute.xlu0 %1665
      %v1671 = vunpack.c.l.b16 %v1653
      %v1672 = vunpack.c.l.b16 %v1654
      %v1673 = vunpack.c.l.b16 %v1655
      %v1674 = vunpack.c.l.b16 %v1656
      %v1675 = vpack.c.b16 %v1672, %v1671
      %v1676 = vpack.c.b16 %v1674, %v1673
      %v1680 = vsel %vm268, %v1666, 0
      %1682 = vmatprep.subr.bf16.mxu0 0
      %1683 = vmatpush1.bf16.msra.mxu0 %v1675
      %1684 = vmatprep.subr.bf16.mxu0 0
      %1685 = vmatpush1.bf16.msra.mxu0 %v1676
      %1686 = vmatprep.subr.bf16.mxu0 0
      %1687 = vmatpush1.bf16.msra.mxu0 0
      %1688 = vmatprep.subr.bf16.mxu0 0
      %1689 = vmatpush1.bf16.msra.mxu0 0
      %1690 = vmatprep.subr.bf16.mxu0 0
      %1691 = vmatpush1.bf16.msra.mxu0 0
      %1692 = vmatprep.subr.bf16.mxu0 0
      %1693 = vmatpush1.bf16.msra.mxu0 0
      %1694 = vmatprep.subr.bf16.mxu0 0
      %1695 = vmatpush1.bf16.msra.mxu0 0
      %1696 = vmatprep.subr.bf16.mxu0 0
      %1697 = vmatpush1.bf16.msra.mxu0 0
      %1698 = vmatprep.subr.bf16.mxu0 0
      %1699 = vmatpush1.bf16.msra.mxu0 0
      %1700 = vmatprep.subr.bf16.mxu0 0
      %1701 = vmatpush1.bf16.msra.mxu0 0
      %1702 = vmatprep.subr.bf16.mxu0 0
      %1703 = vmatpush1.bf16.msra.mxu0 0
      %1704 = vmatprep.subr.bf16.mxu0 0
      %1705 = vmatpush1.bf16.msra.mxu0 0
      %1706 = vmatprep.subr.bf16.mxu0 0
      %1707 = vmatpush1.bf16.msra.mxu0 0
      %1708 = vmatprep.subr.bf16.mxu0 0
      %1709 = vmatpush1.bf16.msra.mxu0 0
      %1710 = vmatprep.subr.bf16.mxu0 0
      %1711 = vmatpush1.bf16.msra.mxu0 0
      %1712 = vmatprep.subr.bf16.mxu0 0
      %1713 = vmatpush1.bf16.msra.mxu0 0
      %1714 = vmatprep.mubr.bf16.mxu0 0
      %1715 = vmatmul.mubr.bf16.gmra.mrb[0].mxu0 %v1680
      %v1716 = vpop.f32.mrb[0].mxu0
      %v1717 = vadd.f32 %v1662, %v1716
      %v1718 = vpop.f32.mrb[0].mxu0
      %v1719 = vpop.f32.mrb[0].mxu0
      %v1720 = vpop.f32.mrb[0].mxu0
      %1721 = vdwg.mxu0
      %v1722 = vxor.u32 %v1717, 2147483648
      %v1723 = vmul.f32 %v1722, 1.442695
      %v1724 = vpow.pop %v1723
      %v1725 = vadd.f32 %v1724, 1.0
      %v1726 = vrcp.pop %v1725
      %v1727 = vmul.f32 1.0, %v1726
      %1728 = vst [vmem:[#allocation14] sm:$0xff] %v1727
    $region53: #{tpu_custom_call.1} parent=1 // pred_fallthru
      _
    // Predicated region
    $region54: #{tpu_custom_call.1} parent=1 // pred_check
      _
    $region55: #{tpu_custom_call.1} parent=1 // pred_check_branch
      %1730 = sbr.rel (0) target = $region57
    $region56: #{tpu_custom_call.1} parent=1 // pred_region
      %s1732 = ssub.s32 128, 128
      %1733 = vsyncadd [#allocation8], %s1732
      %s1735 = sshll.u32 [#allocation14], 4
      %s1736 = int_to_ptr.vmem [resolvable:$true] %s1735
      %1738 = dma.vmem_to_hbm [thread:$0]  %s1736, 128, %s7, [#allocation8]
    $region57: #{tpu_custom_call.1} parent=1 // pred_fallthru
      _
    // Predicated region
    $region58: #{tpu_custom_call.1} parent=1 // pred_check
      _
    $region59: #{tpu_custom_call.1} parent=1 // pred_check_branch
      %1740 = sbr.rel (0) target = $region61
    $region60: #{tpu_custom_call.1} parent=1 // pred_region
      %1741 = dma.done [#allocation8], 128
    $region61: #{tpu_custom_call.1} parent=1 // pred_fallthru
      _
    %1742 = vsyncpa [#allocation7], 1
    %1743 = vsyncpa [#allocation10], 1
    %1744 = vsyncpa [#allocation13], 1
    %1745 = vsyncpa [#allocation8], 1

</llo_original>
